<compile_context>
chip_gen: v7x
topology: tpu7x:2x2x1
jax: 0.10.0
libtpu: 0.0.40
codegen_flags: <defaults>
</compile_context>

<pallas_src>
import jax
import jax.numpy as jnp
from jax import lax
from jax.experimental import pallas as pl
from jax.experimental.pallas import tpu as pltpu


def _round_up(x, m):
    return ((x + m - 1) // m) * m


def prepare_combined_embedding_params(pre_table, tr_table, proj_w, proj_b):
    """One-time (per model) preparation: fuse tables, pad, cast weights.

    Returns (fused_table_f32, w_pad_bf16, b_pad_f32) with
      fused_table: (V_pre, D_cat_pad)   f32, D_cat_pad = roundup(D_pre+D_tr, 128)
      w_pad:       (D_cat_pad, D_out_pad) bf16
      b_pad:       (1, D_out_pad)        f32
    """
    v_pre, d_pre = pre_table.shape
    v_tr, d_tr = tr_table.shape
    d_cat = d_pre + d_tr
    d_out = proj_w.shape[1]
    assert proj_w.shape[0] == d_cat

    d_cat_pad = _round_up(d_cat, 128)
    d_out_pad = _round_up(d_out, 128)

    # Bake the torch.lt / torch.where clamp of the trained embedding into the
    # fused table: rows >= V_tr carry trained row 0 in the trained half.
    ids = jnp.arange(v_pre, dtype=jnp.int32)
    tr_rows = jnp.take(tr_table.astype(jnp.float32),
                       jnp.where(ids < v_tr, ids, jnp.zeros_like(ids)), axis=0)
    fused = jnp.concatenate([pre_table.astype(jnp.float32), tr_rows], axis=1)
    fused = jnp.pad(fused, ((0, 0), (0, d_cat_pad - d_cat)))

    # Zero-pad W rows (padded table cols contribute 0) and cols (lane-dense out).
    w_pad = jnp.pad(proj_w.astype(jnp.float32),
                    ((0, d_cat_pad - d_cat), (0, d_out_pad - d_out)))
    w_pad = w_pad.astype(jnp.bfloat16)
    b_pad = jnp.pad(proj_b.astype(jnp.float32),
                    (0, d_out_pad - d_out)).reshape(1, d_out_pad)
    return fused, w_pad, b_pad


def _make_kernel(tile_n, n_chunks, v_pre, unroll):
    chunk = tile_n // n_chunks

    def kernel(ids_ref,            # SMEM (N_pad,) int32   [scalar prefetch]
               tbl_hbm,            # HBM  (V_pre, D_cat_pad) f32  (fused table)
               w_ref,              # VMEM (D_cat_pad, D_out_pad) bf16, resident
               b_ref,              # VMEM (1, D_out_pad) f32, resident
               out_ref,            # VMEM (tile_n, D_out_pad) f32
               rows,               # VMEM scratch (tile_n, D_cat_pad) f32
               sem):               # DMA sems (n_chunks,)
        tile_base = pl.program_id(0) * tile_n

        def row_copy(src_row, dst_row, c):
            # Single place that builds both the start- and wait-descriptor so
            # their shapes can never desynchronize (only shape + semaphore
            # matter for the wait; the source row is irrelevant there).
            return pltpu.make_async_copy(
                tbl_hbm.at[pl.ds(src_row, 1), :],
                rows.at[pl.ds(dst_row, 1), :],
                sem.at[c])

        def make_issue(c):
            base = c * chunk

            def issue_row(r, carry):
                tok = ids_ref[tile_base + base + r]
                # clamp to the table range (matches jnp.take clip semantics;
                # the trained-vocab clamp is already baked into the table).
                src = jnp.minimum(jnp.maximum(tok, 0), v_pre - 1)
                row_copy(src, base + r, c).start()
                return carry

            return issue_row

        def make_wait(c):
            base = c * chunk

            def wait_row(r, carry):
                row_copy(0, base + r, c).wait()
                return carry

            return wait_row

        # ---- Phase 1: issue EVERY row gather for this tile up front -------
        # (scalar id reads + descriptor issue happen before any wait, so the
        # issue stream never stalls on semaphores / SMEM forwarding.)
        for c in range(n_chunks):
            lax.fori_loop(0, chunk, make_issue(c), 0, unroll=unroll)

        # ---- Phase 2: chunk-wise wait + projection -------------------------
        # Later chunks' DMAs complete while earlier chunks run on the MXU.
        for c in range(n_chunks):
            lax.fori_loop(0, chunk, make_wait(c), 0, unroll=unroll)
            lo, hi = c * chunk, (c + 1) * chunk
            xt = rows[lo:hi, :].astype(jnp.bfloat16)        # bf16 MXU operands
            out_ref[lo:hi, :] = (
                jnp.dot(xt, w_ref[...], preferred_element_type=jnp.float32)
                + b_ref[...])

    return kernel


def combined_embedding(x, fused_table, w_pad, b_pad, *, d_out,
                       tile_n=512, n_chunks=4, unroll=8):
    """x: (B, S) int32 ids -> (B, S, d_out) float32 (eval-mode forward)."""
    b_sz, s_sz = x.shape
    n = b_sz * s_sz
    v_pre, d_cat_pad = fused_table.shape
    d_cat_pad_w, d_out_pad = w_pad.shape
    assert d_cat_pad == d_cat_pad_w
    assert d_cat_pad % 128 == 0 and d_out_pad % 128 == 0
    assert tile_n % n_chunks == 0
    chunk = tile_n // n_chunks
    assert chunk % 8 == 0, "chunk (tile_n / n_chunks) must be a multiple of 8"
    unroll = max(1, min(unroll, chunk))

    n_pad = _round_up(n, tile_n)
    ids = x.reshape(-1).astype(jnp.int32)
    if n_pad != n:
        ids = jnp.pad(ids, (0, n_pad - n))            # pad with valid token 0
    grid = (n_pad // tile_n,)

    kernel = _make_kernel(tile_n, n_chunks, v_pre, unroll)

    # VMEM budget (double-buffered output block, resident W/bias, gather
    # scratch) -> explicit limit so v5e's 16 MiB default does not reject it
    # and v7x's 64 MiB physical is respected.
    vmem_need = (tile_n * d_cat_pad * 4
                 + 2 * tile_n * d_out_pad * 4
                 + 2 * d_cat_pad * d_out_pad * 2
                 + 2 * d_out_pad * 4)
    vmem_limit = int(min(100 * 1024 * 1024, max(32 * 1024 * 1024, 2 * vmem_need)))

    flops = 2 * n_pad * d_cat_pad * d_out_pad
    bytes_accessed = (n_pad * 4                       # ids
                      + n_pad * d_cat_pad * 4         # gathered rows (f32)
                      + d_cat_pad * d_out_pad * 2     # bf16 weights
                      + d_out_pad * 4                 # bias
                      + n_pad * d_out_pad * 4)        # output

    out = pl.pallas_call(
        kernel,
        out_shape=jax.ShapeDtypeStruct((n_pad, d_out_pad), jnp.float32),
        grid_spec=pltpu.PrefetchScalarGridSpec(
            num_scalar_prefetch=1,                    # ids -> SMEM
            grid=grid,
            in_specs=[
                pl.BlockSpec(memory_space=pl.ANY),                 # fused table, HBM
                pl.BlockSpec((d_cat_pad, d_out_pad), lambda i, ids: (0, 0)),  # W resident
                pl.BlockSpec((1, d_out_pad), lambda i, ids: (0, 0)),          # bias resident
            ],
            out_specs=pl.BlockSpec((tile_n, d_out_pad), lambda i, ids: (i, 0)),
            scratch_shapes=[
                pltpu.VMEM((tile_n, d_cat_pad), jnp.float32),      # gathered rows
                pltpu.SemaphoreType.DMA((n_chunks,)),              # per-chunk DMA sems
            ],
        ),
        compiler_params=pltpu.CompilerParams(
            dimension_semantics=("parallel",),
            vmem_limit_bytes=vmem_limit),
        cost_estimate=pl.CostEstimate(flops=flops, transcendentals=0,
                                      bytes_accessed=bytes_accessed),
    )(ids, fused_table, w_pad, b_pad)

    return out[:n, :d_out].reshape(b_sz, s_sz, d_out)


def _reference(x, pre_table, tr_table, proj_w, proj_b):
    emb_pre = jnp.take(pre_table, x, axis=0)
    v_tr = tr_table.shape[0]
    masked = jnp.where(x < v_tr, x, jnp.zeros_like(x))
    emb_tr = jnp.take(tr_table, masked, axis=0)
    cat = jnp.concatenate([emb_pre, emb_tr], axis=-1)
    return cat @ proj_w + proj_b


if __name__ == "__main__":
    # Small, deterministic synthetic configuration.
    B, S = 2, 16
    V_PRE, D_PRE = 64, 32     # pretrained embedding: vocab 64, dim 32
    V_TR, D_TR = 48, 32       # trained embedding:    vocab 48, dim 32
    D_OUT = 32                # output_dimension (project=True)

    key = jax.random.PRNGKey(0)
    k_ids, k_pre, k_tr, k_w, k_b = jax.random.split(key, 5)

    # ids drawn from the full pretrained vocab so some exceed V_TR and
    # exercise the torch.lt / torch.where clamping path.
    x = jax.random.randint(k_ids, (B, S), 0, V_PRE, dtype=jnp.int32)

    pre_table = jax.random.normal(k_pre, (V_PRE, D_PRE), jnp.float32) * 0.1
    tr_table = jax.random.normal(k_tr, (V_TR, D_TR), jnp.float32) * 0.1
    proj_w = jax.random.normal(k_w, (D_PRE + D_TR, D_OUT), jnp.float32) * 0.1
    proj_b = jax.random.normal(k_b, (D_OUT,), jnp.float32) * 0.1

    # One-time preparation (fused table, padded bf16 weights) -- kept out of
    # the per-call hot path.
    fused_tbl, w_pad, b_pad = prepare_combined_embedding_params(
        pre_table, tr_table, proj_w, proj_b)

    # tile_n=16 / n_chunks=2 keeps the grid multi-step and exercises the
    # chunked gather/compute overlap at this toy size; production sizes
    # would use the defaults (tile_n=512, n_chunks=4).
    out = combined_embedding(x, fused_tbl, w_pad, b_pad, d_out=D_OUT,
                             tile_n=16, n_chunks=2)
    out = jax.block_until_ready(out)

    ref = _reference(x, pre_table, tr_table, proj_w, proj_b)
    assert out.shape == (B, S, D_OUT), out.shape
    # bf16 weights / bf16 MXU operands -> compare with bf16-level tolerance.
    assert jnp.allclose(out, ref, atol=1e-2, rtol=1e-2), "mismatch vs reference"

    print("KERNEL_OK")
</pallas_src>

<mosaic_0001>
module attributes {stable_mosaic.version = 11 : i64} {
  func.func @kernel(%arg0: i32, %arg1: memref<32xi32, #tpu.memory_space<smem>>, %arg2: memref<64x128xf32, #tpu.memory_space<any>>, %arg3: memref<128x128xbf16, #tpu.memory_space<vmem>>, %arg4: memref<1x128xf32, #tpu.memory_space<vmem>>, %arg5: memref<16x128xf32, #tpu.memory_space<vmem>>, %arg6: memref<16x128xf32, #tpu.memory_space<vmem>>, %arg7: memref<2x!tpu.dma_semaphore, #tpu.memory_space<semaphore_mem>>) attributes {dimension_semantics = [#tpu.dimension_semantics<parallel>], iteration_bounds = array<i64: 2>, scalar_prefetch = 1 : i64, scratch_operands = 2 : i64, tpu.core_type = #tpu.core_type<tc>, window_params = [{}, {pipeline_mode = #tpu.pipeline_mode<synchronous>, transform_indices = @transform_1, window_bounds = array<i64: 128, 128>}, {pipeline_mode = #tpu.pipeline_mode<synchronous>, transform_indices = @transform_2, window_bounds = array<i64: 1, 128>}, {transform_indices = @transform_3, window_bounds = array<i64: 16, 128>}]} {
    %c16_i32 = arith.constant 16 : i32
    %0 = arith.muli %arg0, %c16_i32 : i32
    %c0_i32 = arith.constant 0 : i32
    %c0_i32_0 = arith.constant 0 : i32
    %1 = arith.addi %0, %c0_i32_0 : i32
    %2 = arith.addi %1, %c0_i32 : i32
    %3 = arith.index_cast %2 : i32 to index
    %4 = memref.load %arg1[%3] : memref<32xi32, #tpu.memory_space<smem>>
    %c0_i32_1 = arith.constant 0 : i32
    %5 = arith.maxsi %4, %c0_i32_1 : i32
    %c63_i32 = arith.constant 63 : i32
    %6 = arith.minsi %5, %c63_i32 : i32
    %c0_i32_2 = arith.constant 0 : i32
    %7 = arith.addi %c0_i32_2, %c0_i32 : i32
    %c0_i32_3 = arith.constant 0 : i32
    %c0_i32_4 = arith.constant 0 : i32
    %8 = tpu.memref_slice %arg2[%6, %c0_i32_4] : memref<64x128xf32, #tpu.memory_space<any>> -> memref<1x128xf32, #tpu.memory_space<any>>
    %c0_i32_5 = arith.constant 0 : i32
    %9 = tpu.memref_slice %arg6[%7, %c0_i32_5] : memref<16x128xf32, #tpu.memory_space<vmem>> -> memref<1x128xf32, #tpu.memory_space<vmem>>
    %10 = tpu.memref_slice %arg7[%c0_i32_3] : memref<2x!tpu.dma_semaphore, #tpu.memory_space<semaphore_mem>> -> memref<1x!tpu.dma_semaphore, #tpu.memory_space<semaphore_mem>>
    %11 = tpu.memref_squeeze %10 : memref<1x!tpu.dma_semaphore, #tpu.memory_space<semaphore_mem>> -> memref<!tpu.dma_semaphore, #tpu.memory_space<semaphore_mem>>
    tpu.enqueue_dma source(%8 : memref<1x128xf32, #tpu.memory_space<any>>) target(%9 : memref<1x128xf32, #tpu.memory_space<vmem>>) target_semaphore(%11 : memref<!tpu.dma_semaphore, #tpu.memory_space<semaphore_mem>>)
    %c1_i32 = arith.constant 1 : i32
    %c0_i32_6 = arith.constant 0 : i32
    %12 = arith.addi %0, %c0_i32_6 : i32
    %13 = arith.addi %12, %c1_i32 : i32
    %14 = arith.index_cast %13 : i32 to index
    %15 = memref.load %arg1[%14] : memref<32xi32, #tpu.memory_space<smem>>
    %c0_i32_7 = arith.constant 0 : i32
    %16 = arith.maxsi %15, %c0_i32_7 : i32
    %c63_i32_8 = arith.constant 63 : i32
    %17 = arith.minsi %16, %c63_i32_8 : i32
    %c0_i32_9 = arith.constant 0 : i32
    %18 = arith.addi %c0_i32_9, %c1_i32 : i32
    %c0_i32_10 = arith.constant 0 : i32
    %c0_i32_11 = arith.constant 0 : i32
    %19 = tpu.memref_slice %arg2[%17, %c0_i32_11] : memref<64x128xf32, #tpu.memory_space<any>> -> memref<1x128xf32, #tpu.memory_space<any>>
    %c0_i32_12 = arith.constant 0 : i32
    %20 = tpu.memref_slice %arg6[%18, %c0_i32_12] : memref<16x128xf32, #tpu.memory_space<vmem>> -> memref<1x128xf32, #tpu.memory_space<vmem>>
    %21 = tpu.memref_slice %arg7[%c0_i32_10] : memref<2x!tpu.dma_semaphore, #tpu.memory_space<semaphore_mem>> -> memref<1x!tpu.dma_semaphore, #tpu.memory_space<semaphore_mem>>
    %22 = tpu.memref_squeeze %21 : memref<1x!tpu.dma_semaphore, #tpu.memory_space<semaphore_mem>> -> memref<!tpu.dma_semaphore, #tpu.memory_space<semaphore_mem>>
    tpu.enqueue_dma source(%19 : memref<1x128xf32, #tpu.memory_space<any>>) target(%20 : memref<1x128xf32, #tpu.memory_space<vmem>>) target_semaphore(%22 : memref<!tpu.dma_semaphore, #tpu.memory_space<semaphore_mem>>)
    %c2_i32 = arith.constant 2 : i32
    %c0_i32_13 = arith.constant 0 : i32
    %23 = arith.addi %0, %c0_i32_13 : i32
    %24 = arith.addi %23, %c2_i32 : i32
    %25 = arith.index_cast %24 : i32 to index
    %26 = memref.load %arg1[%25] : memref<32xi32, #tpu.memory_space<smem>>
    %c0_i32_14 = arith.constant 0 : i32
    %27 = arith.maxsi %26, %c0_i32_14 : i32
    %c63_i32_15 = arith.constant 63 : i32
    %28 = arith.minsi %27, %c63_i32_15 : i32
    %c0_i32_16 = arith.constant 0 : i32
    %29 = arith.addi %c0_i32_16, %c2_i32 : i32
    %c0_i32_17 = arith.constant 0 : i32
    %c0_i32_18 = arith.constant 0 : i32
    %30 = tpu.memref_slice %arg2[%28, %c0_i32_18] : memref<64x128xf32, #tpu.memory_space<any>> -> memref<1x128xf32, #tpu.memory_space<any>>
    %c0_i32_19 = arith.constant 0 : i32
    %31 = tpu.memref_slice %arg6[%29, %c0_i32_19] : memref<16x128xf32, #tpu.memory_space<vmem>> -> memref<1x128xf32, #tpu.memory_space<vmem>>
    %32 = tpu.memref_slice %arg7[%c0_i32_17] : memref<2x!tpu.dma_semaphore, #tpu.memory_space<semaphore_mem>> -> memref<1x!tpu.dma_semaphore, #tpu.memory_space<semaphore_mem>>
    %33 = tpu.memref_squeeze %32 : memref<1x!tpu.dma_semaphore, #tpu.memory_space<semaphore_mem>> -> memref<!tpu.dma_semaphore, #tpu.memory_space<semaphore_mem>>
    tpu.enqueue_dma source(%30 : memref<1x128xf32, #tpu.memory_space<any>>) target(%31 : memref<1x128xf32, #tpu.memory_space<vmem>>) target_semaphore(%33 : memref<!tpu.dma_semaphore, #tpu.memory_space<semaphore_mem>>)
    %c3_i32 = arith.constant 3 : i32
    %c0_i32_20 = arith.constant 0 : i32
    %34 = arith.addi %0, %c0_i32_20 : i32
    %35 = arith.addi %34, %c3_i32 : i32
    %36 = arith.index_cast %35 : i32 to index
    %37 = memref.load %arg1[%36] : memref<32xi32, #tpu.memory_space<smem>>
    %c0_i32_21 = arith.constant 0 : i32
    %38 = arith.maxsi %37, %c0_i32_21 : i32
    %c63_i32_22 = arith.constant 63 : i32
    %39 = arith.minsi %38, %c63_i32_22 : i32
    %c0_i32_23 = arith.constant 0 : i32
    %40 = arith.addi %c0_i32_23, %c3_i32 : i32
    %c0_i32_24 = arith.constant 0 : i32
    %c0_i32_25 = arith.constant 0 : i32
    %41 = tpu.memref_slice %arg2[%39, %c0_i32_25] : memref<64x128xf32, #tpu.memory_space<any>> -> memref<1x128xf32, #tpu.memory_space<any>>
    %c0_i32_26 = arith.constant 0 : i32
    %42 = tpu.memref_slice %arg6[%40, %c0_i32_26] : memref<16x128xf32, #tpu.memory_space<vmem>> -> memref<1x128xf32, #tpu.memory_space<vmem>>
    %43 = tpu.memref_slice %arg7[%c0_i32_24] : memref<2x!tpu.dma_semaphore, #tpu.memory_space<semaphore_mem>> -> memref<1x!tpu.dma_semaphore, #tpu.memory_space<semaphore_mem>>
    %44 = tpu.memref_squeeze %43 : memref<1x!tpu.dma_semaphore, #tpu.memory_space<semaphore_mem>> -> memref<!tpu.dma_semaphore, #tpu.memory_space<semaphore_mem>>
    tpu.enqueue_dma source(%41 : memref<1x128xf32, #tpu.memory_space<any>>) target(%42 : memref<1x128xf32, #tpu.memory_space<vmem>>) target_semaphore(%44 : memref<!tpu.dma_semaphore, #tpu.memory_space<semaphore_mem>>)
    %c4_i32 = arith.constant 4 : i32
    %c0_i32_27 = arith.constant 0 : i32
    %45 = arith.addi %0, %c0_i32_27 : i32
    %46 = arith.addi %45, %c4_i32 : i32
    %47 = arith.index_cast %46 : i32 to index
    %48 = memref.load %arg1[%47] : memref<32xi32, #tpu.memory_space<smem>>
    %c0_i32_28 = arith.constant 0 : i32
    %49 = arith.maxsi %48, %c0_i32_28 : i32
    %c63_i32_29 = arith.constant 63 : i32
    %50 = arith.minsi %49, %c63_i32_29 : i32
    %c0_i32_30 = arith.constant 0 : i32
    %51 = arith.addi %c0_i32_30, %c4_i32 : i32
    %c0_i32_31 = arith.constant 0 : i32
    %c0_i32_32 = arith.constant 0 : i32
    %52 = tpu.memref_slice %arg2[%50, %c0_i32_32] : memref<64x128xf32, #tpu.memory_space<any>> -> memref<1x128xf32, #tpu.memory_space<any>>
    %c0_i32_33 = arith.constant 0 : i32
    %53 = tpu.memref_slice %arg6[%51, %c0_i32_33] : memref<16x128xf32, #tpu.memory_space<vmem>> -> memref<1x128xf32, #tpu.memory_space<vmem>>
    %54 = tpu.memref_slice %arg7[%c0_i32_31] : memref<2x!tpu.dma_semaphore, #tpu.memory_space<semaphore_mem>> -> memref<1x!tpu.dma_semaphore, #tpu.memory_space<semaphore_mem>>
    %55 = tpu.memref_squeeze %54 : memref<1x!tpu.dma_semaphore, #tpu.memory_space<semaphore_mem>> -> memref<!tpu.dma_semaphore, #tpu.memory_space<semaphore_mem>>
    tpu.enqueue_dma source(%52 : memref<1x128xf32, #tpu.memory_space<any>>) target(%53 : memref<1x128xf32, #tpu.memory_space<vmem>>) target_semaphore(%55 : memref<!tpu.dma_semaphore, #tpu.memory_space<semaphore_mem>>)
    %c5_i32 = arith.constant 5 : i32
    %c0_i32_34 = arith.constant 0 : i32
    %56 = arith.addi %0, %c0_i32_34 : i32
    %57 = arith.addi %56, %c5_i32 : i32
    %58 = arith.index_cast %57 : i32 to index
    %59 = memref.load %arg1[%58] : memref<32xi32, #tpu.memory_space<smem>>
    %c0_i32_35 = arith.constant 0 : i32
    %60 = arith.maxsi %59, %c0_i32_35 : i32
    %c63_i32_36 = arith.constant 63 : i32
    %61 = arith.minsi %60, %c63_i32_36 : i32
    %c0_i32_37 = arith.constant 0 : i32
    %62 = arith.addi %c0_i32_37, %c5_i32 : i32
    %c0_i32_38 = arith.constant 0 : i32
    %c0_i32_39 = arith.constant 0 : i32
    %63 = tpu.memref_slice %arg2[%61, %c0_i32_39] : memref<64x128xf32, #tpu.memory_space<any>> -> memref<1x128xf32, #tpu.memory_space<any>>
    %c0_i32_40 = arith.constant 0 : i32
    %64 = tpu.memref_slice %arg6[%62, %c0_i32_40] : memref<16x128xf32, #tpu.memory_space<vmem>> -> memref<1x128xf32, #tpu.memory_space<vmem>>
    %65 = tpu.memref_slice %arg7[%c0_i32_38] : memref<2x!tpu.dma_semaphore, #tpu.memory_space<semaphore_mem>> -> memref<1x!tpu.dma_semaphore, #tpu.memory_space<semaphore_mem>>
    %66 = tpu.memref_squeeze %65 : memref<1x!tpu.dma_semaphore, #tpu.memory_space<semaphore_mem>> -> memref<!tpu.dma_semaphore, #tpu.memory_space<semaphore_mem>>
    tpu.enqueue_dma source(%63 : memref<1x128xf32, #tpu.memory_space<any>>) target(%64 : memref<1x128xf32, #tpu.memory_space<vmem>>) target_semaphore(%66 : memref<!tpu.dma_semaphore, #tpu.memory_space<semaphore_mem>>)
    %c6_i32 = arith.constant 6 : i32
    %c0_i32_41 = arith.constant 0 : i32
    %67 = arith.addi %0, %c0_i32_41 : i32
    %68 = arith.addi %67, %c6_i32 : i32
    %69 = arith.index_cast %68 : i32 to index
    %70 = memref.load %arg1[%69] : memref<32xi32, #tpu.memory_space<smem>>
    %c0_i32_42 = arith.constant 0 : i32
    %71 = arith.maxsi %70, %c0_i32_42 : i32
    %c63_i32_43 = arith.constant 63 : i32
    %72 = arith.minsi %71, %c63_i32_43 : i32
    %c0_i32_44 = arith.constant 0 : i32
    %73 = arith.addi %c0_i32_44, %c6_i32 : i32
    %c0_i32_45 = arith.constant 0 : i32
    %c0_i32_46 = arith.constant 0 : i32
    %74 = tpu.memref_slice %arg2[%72, %c0_i32_46] : memref<64x128xf32, #tpu.memory_space<any>> -> memref<1x128xf32, #tpu.memory_space<any>>
    %c0_i32_47 = arith.constant 0 : i32
    %75 = tpu.memref_slice %arg6[%73, %c0_i32_47] : memref<16x128xf32, #tpu.memory_space<vmem>> -> memref<1x128xf32, #tpu.memory_space<vmem>>
    %76 = tpu.memref_slice %arg7[%c0_i32_45] : memref<2x!tpu.dma_semaphore, #tpu.memory_space<semaphore_mem>> -> memref<1x!tpu.dma_semaphore, #tpu.memory_space<semaphore_mem>>
    %77 = tpu.memref_squeeze %76 : memref<1x!tpu.dma_semaphore, #tpu.memory_space<semaphore_mem>> -> memref<!tpu.dma_semaphore, #tpu.memory_space<semaphore_mem>>
    tpu.enqueue_dma source(%74 : memref<1x128xf32, #tpu.memory_space<any>>) target(%75 : memref<1x128xf32, #tpu.memory_space<vmem>>) target_semaphore(%77 : memref<!tpu.dma_semaphore, #tpu.memory_space<semaphore_mem>>)
    %c7_i32 = arith.constant 7 : i32
    %c0_i32_48 = arith.constant 0 : i32
    %78 = arith.addi %0, %c0_i32_48 : i32
    %79 = arith.addi %78, %c7_i32 : i32
    %80 = arith.index_cast %79 : i32 to index
    %81 = memref.load %arg1[%80] : memref<32xi32, #tpu.memory_space<smem>>
    %c0_i32_49 = arith.constant 0 : i32
    %82 = arith.maxsi %81, %c0_i32_49 : i32
    %c63_i32_50 = arith.constant 63 : i32
    %83 = arith.minsi %82, %c63_i32_50 : i32
    %c0_i32_51 = arith.constant 0 : i32
    %84 = arith.addi %c0_i32_51, %c7_i32 : i32
    %c0_i32_52 = arith.constant 0 : i32
    %c0_i32_53 = arith.constant 0 : i32
    %85 = tpu.memref_slice %arg2[%83, %c0_i32_53] : memref<64x128xf32, #tpu.memory_space<any>> -> memref<1x128xf32, #tpu.memory_space<any>>
    %c0_i32_54 = arith.constant 0 : i32
    %86 = tpu.memref_slice %arg6[%84, %c0_i32_54] : memref<16x128xf32, #tpu.memory_space<vmem>> -> memref<1x128xf32, #tpu.memory_space<vmem>>
    %87 = tpu.memref_slice %arg7[%c0_i32_52] : memref<2x!tpu.dma_semaphore, #tpu.memory_space<semaphore_mem>> -> memref<1x!tpu.dma_semaphore, #tpu.memory_space<semaphore_mem>>
    %88 = tpu.memref_squeeze %87 : memref<1x!tpu.dma_semaphore, #tpu.memory_space<semaphore_mem>> -> memref<!tpu.dma_semaphore, #tpu.memory_space<semaphore_mem>>
    tpu.enqueue_dma source(%85 : memref<1x128xf32, #tpu.memory_space<any>>) target(%86 : memref<1x128xf32, #tpu.memory_space<vmem>>) target_semaphore(%88 : memref<!tpu.dma_semaphore, #tpu.memory_space<semaphore_mem>>)
    %c8_i32 = arith.constant 8 : i32
    %c0_i32_55 = arith.constant 0 : i32
    %c8_i32_56 = arith.constant 8 : i32
    %89 = arith.addi %0, %c8_i32_56 : i32
    %90 = arith.addi %89, %c0_i32_55 : i32
    %91 = arith.index_cast %90 : i32 to index
    %92 = memref.load %arg1[%91] : memref<32xi32, #tpu.memory_space<smem>>
    %c0_i32_57 = arith.constant 0 : i32
    %93 = arith.maxsi %92, %c0_i32_57 : i32
    %c63_i32_58 = arith.constant 63 : i32
    %94 = arith.minsi %93, %c63_i32_58 : i32
    %c8_i32_59 = arith.constant 8 : i32
    %95 = arith.addi %c8_i32_59, %c0_i32_55 : i32
    %c1_i32_60 = arith.constant 1 : i32
    %c0_i32_61 = arith.constant 0 : i32
    %96 = tpu.memref_slice %arg2[%94, %c0_i32_61] : memref<64x128xf32, #tpu.memory_space<any>> -> memref<1x128xf32, #tpu.memory_space<any>>
    %c0_i32_62 = arith.constant 0 : i32
    %97 = tpu.memref_slice %arg6[%95, %c0_i32_62] : memref<16x128xf32, #tpu.memory_space<vmem>> -> memref<1x128xf32, #tpu.memory_space<vmem>>
    %98 = tpu.memref_slice %arg7[%c1_i32_60] : memref<2x!tpu.dma_semaphore, #tpu.memory_space<semaphore_mem>> -> memref<1x!tpu.dma_semaphore, #tpu.memory_space<semaphore_mem>>
    %99 = tpu.memref_squeeze %98 : memref<1x!tpu.dma_semaphore, #tpu.memory_space<semaphore_mem>> -> memref<!tpu.dma_semaphore, #tpu.memory_space<semaphore_mem>>
    tpu.enqueue_dma source(%96 : memref<1x128xf32, #tpu.memory_space<any>>) target(%97 : memref<1x128xf32, #tpu.memory_space<vmem>>) target_semaphore(%99 : memref<!tpu.dma_semaphore, #tpu.memory_space<semaphore_mem>>)
    %c1_i32_63 = arith.constant 1 : i32
    %c8_i32_64 = arith.constant 8 : i32
    %100 = arith.addi %0, %c8_i32_64 : i32
    %101 = arith.addi %100, %c1_i32_63 : i32
    %102 = arith.index_cast %101 : i32 to index
    %103 = memref.load %arg1[%102] : memref<32xi32, #tpu.memory_space<smem>>
    %c0_i32_65 = arith.constant 0 : i32
    %104 = arith.maxsi %103, %c0_i32_65 : i32
    %c63_i32_66 = arith.constant 63 : i32
    %105 = arith.minsi %104, %c63_i32_66 : i32
    %c8_i32_67 = arith.constant 8 : i32
    %106 = arith.addi %c8_i32_67, %c1_i32_63 : i32
    %c1_i32_68 = arith.constant 1 : i32
    %c0_i32_69 = arith.constant 0 : i32
    %107 = tpu.memref_slice %arg2[%105, %c0_i32_69] : memref<64x128xf32, #tpu.memory_space<any>> -> memref<1x128xf32, #tpu.memory_space<any>>
    %c0_i32_70 = arith.constant 0 : i32
    %108 = tpu.memref_slice %arg6[%106, %c0_i32_70] : memref<16x128xf32, #tpu.memory_space<vmem>> -> memref<1x128xf32, #tpu.memory_space<vmem>>
    %109 = tpu.memref_slice %arg7[%c1_i32_68] : memref<2x!tpu.dma_semaphore, #tpu.memory_space<semaphore_mem>> -> memref<1x!tpu.dma_semaphore, #tpu.memory_space<semaphore_mem>>
    %110 = tpu.memref_squeeze %109 : memref<1x!tpu.dma_semaphore, #tpu.memory_space<semaphore_mem>> -> memref<!tpu.dma_semaphore, #tpu.memory_space<semaphore_mem>>
    tpu.enqueue_dma source(%107 : memref<1x128xf32, #tpu.memory_space<any>>) target(%108 : memref<1x128xf32, #tpu.memory_space<vmem>>) target_semaphore(%110 : memref<!tpu.dma_semaphore, #tpu.memory_space<semaphore_mem>>)
    %c2_i32_71 = arith.constant 2 : i32
    %c8_i32_72 = arith.constant 8 : i32
    %111 = arith.addi %0, %c8_i32_72 : i32
    %112 = arith.addi %111, %c2_i32_71 : i32
    %113 = arith.index_cast %112 : i32 to index
    %114 = memref.load %arg1[%113] : memref<32xi32, #tpu.memory_space<smem>>
    %c0_i32_73 = arith.constant 0 : i32
    %115 = arith.maxsi %114, %c0_i32_73 : i32
    %c63_i32_74 = arith.constant 63 : i32
    %116 = arith.minsi %115, %c63_i32_74 : i32
    %c8_i32_75 = arith.constant 8 : i32
    %117 = arith.addi %c8_i32_75, %c2_i32_71 : i32
    %c1_i32_76 = arith.constant 1 : i32
    %c0_i32_77 = arith.constant 0 : i32
    %118 = tpu.memref_slice %arg2[%116, %c0_i32_77] : memref<64x128xf32, #tpu.memory_space<any>> -> memref<1x128xf32, #tpu.memory_space<any>>
    %c0_i32_78 = arith.constant 0 : i32
    %119 = tpu.memref_slice %arg6[%117, %c0_i32_78] : memref<16x128xf32, #tpu.memory_space<vmem>> -> memref<1x128xf32, #tpu.memory_space<vmem>>
    %120 = tpu.memref_slice %arg7[%c1_i32_76] : memref<2x!tpu.dma_semaphore, #tpu.memory_space<semaphore_mem>> -> memref<1x!tpu.dma_semaphore, #tpu.memory_space<semaphore_mem>>
    %121 = tpu.memref_squeeze %120 : memref<1x!tpu.dma_semaphore, #tpu.memory_space<semaphore_mem>> -> memref<!tpu.dma_semaphore, #tpu.memory_space<semaphore_mem>>
    tpu.enqueue_dma source(%118 : memref<1x128xf32, #tpu.memory_space<any>>) target(%119 : memref<1x128xf32, #tpu.memory_space<vmem>>) target_semaphore(%121 : memref<!tpu.dma_semaphore, #tpu.memory_space<semaphore_mem>>)
    %c3_i32_79 = arith.constant 3 : i32
    %c8_i32_80 = arith.constant 8 : i32
    %122 = arith.addi %0, %c8_i32_80 : i32
    %123 = arith.addi %122, %c3_i32_79 : i32
    %124 = arith.index_cast %123 : i32 to index
    %125 = memref.load %arg1[%124] : memref<32xi32, #tpu.memory_space<smem>>
    %c0_i32_81 = arith.constant 0 : i32
    %126 = arith.maxsi %125, %c0_i32_81 : i32
    %c63_i32_82 = arith.constant 63 : i32
    %127 = arith.minsi %126, %c63_i32_82 : i32
    %c8_i32_83 = arith.constant 8 : i32
    %128 = arith.addi %c8_i32_83, %c3_i32_79 : i32
    %c1_i32_84 = arith.constant 1 : i32
    %c0_i32_85 = arith.constant 0 : i32
    %129 = tpu.memref_slice %arg2[%127, %c0_i32_85] : memref<64x128xf32, #tpu.memory_space<any>> -> memref<1x128xf32, #tpu.memory_space<any>>
    %c0_i32_86 = arith.constant 0 : i32
    %130 = tpu.memref_slice %arg6[%128, %c0_i32_86] : memref<16x128xf32, #tpu.memory_space<vmem>> -> memref<1x128xf32, #tpu.memory_space<vmem>>
    %131 = tpu.memref_slice %arg7[%c1_i32_84] : memref<2x!tpu.dma_semaphore, #tpu.memory_space<semaphore_mem>> -> memref<1x!tpu.dma_semaphore, #tpu.memory_space<semaphore_mem>>
    %132 = tpu.memref_squeeze %131 : memref<1x!tpu.dma_semaphore, #tpu.memory_space<semaphore_mem>> -> memref<!tpu.dma_semaphore, #tpu.memory_space<semaphore_mem>>
    tpu.enqueue_dma source(%129 : memref<1x128xf32, #tpu.memory_space<any>>) target(%130 : memref<1x128xf32, #tpu.memory_space<vmem>>) target_semaphore(%132 : memref<!tpu.dma_semaphore, #tpu.memory_space<semaphore_mem>>)
    %c4_i32_87 = arith.constant 4 : i32
    %c8_i32_88 = arith.constant 8 : i32
    %133 = arith.addi %0, %c8_i32_88 : i32
    %134 = arith.addi %133, %c4_i32_87 : i32
    %135 = arith.index_cast %134 : i32 to index
    %136 = memref.load %arg1[%135] : memref<32xi32, #tpu.memory_space<smem>>
    %c0_i32_89 = arith.constant 0 : i32
    %137 = arith.maxsi %136, %c0_i32_89 : i32
    %c63_i32_90 = arith.constant 63 : i32
    %138 = arith.minsi %137, %c63_i32_90 : i32
    %c8_i32_91 = arith.constant 8 : i32
    %139 = arith.addi %c8_i32_91, %c4_i32_87 : i32
    %c1_i32_92 = arith.constant 1 : i32
    %c0_i32_93 = arith.constant 0 : i32
    %140 = tpu.memref_slice %arg2[%138, %c0_i32_93] : memref<64x128xf32, #tpu.memory_space<any>> -> memref<1x128xf32, #tpu.memory_space<any>>
    %c0_i32_94 = arith.constant 0 : i32
    %141 = tpu.memref_slice %arg6[%139, %c0_i32_94] : memref<16x128xf32, #tpu.memory_space<vmem>> -> memref<1x128xf32, #tpu.memory_space<vmem>>
    %142 = tpu.memref_slice %arg7[%c1_i32_92] : memref<2x!tpu.dma_semaphore, #tpu.memory_space<semaphore_mem>> -> memref<1x!tpu.dma_semaphore, #tpu.memory_space<semaphore_mem>>
    %143 = tpu.memref_squeeze %142 : memref<1x!tpu.dma_semaphore, #tpu.memory_space<semaphore_mem>> -> memref<!tpu.dma_semaphore, #tpu.memory_space<semaphore_mem>>
    tpu.enqueue_dma source(%140 : memref<1x128xf32, #tpu.memory_space<any>>) target(%141 : memref<1x128xf32, #tpu.memory_space<vmem>>) target_semaphore(%143 : memref<!tpu.dma_semaphore, #tpu.memory_space<semaphore_mem>>)
    %c5_i32_95 = arith.constant 5 : i32
    %c8_i32_96 = arith.constant 8 : i32
    %144 = arith.addi %0, %c8_i32_96 : i32
    %145 = arith.addi %144, %c5_i32_95 : i32
    %146 = arith.index_cast %145 : i32 to index
    %147 = memref.load %arg1[%146] : memref<32xi32, #tpu.memory_space<smem>>
    %c0_i32_97 = arith.constant 0 : i32
    %148 = arith.maxsi %147, %c0_i32_97 : i32
    %c63_i32_98 = arith.constant 63 : i32
    %149 = arith.minsi %148, %c63_i32_98 : i32
    %c8_i32_99 = arith.constant 8 : i32
    %150 = arith.addi %c8_i32_99, %c5_i32_95 : i32
    %c1_i32_100 = arith.constant 1 : i32
    %c0_i32_101 = arith.constant 0 : i32
    %151 = tpu.memref_slice %arg2[%149, %c0_i32_101] : memref<64x128xf32, #tpu.memory_space<any>> -> memref<1x128xf32, #tpu.memory_space<any>>
    %c0_i32_102 = arith.constant 0 : i32
    %152 = tpu.memref_slice %arg6[%150, %c0_i32_102] : memref<16x128xf32, #tpu.memory_space<vmem>> -> memref<1x128xf32, #tpu.memory_space<vmem>>
    %153 = tpu.memref_slice %arg7[%c1_i32_100] : memref<2x!tpu.dma_semaphore, #tpu.memory_space<semaphore_mem>> -> memref<1x!tpu.dma_semaphore, #tpu.memory_space<semaphore_mem>>
    %154 = tpu.memref_squeeze %153 : memref<1x!tpu.dma_semaphore, #tpu.memory_space<semaphore_mem>> -> memref<!tpu.dma_semaphore, #tpu.memory_space<semaphore_mem>>
    tpu.enqueue_dma source(%151 : memref<1x128xf32, #tpu.memory_space<any>>) target(%152 : memref<1x128xf32, #tpu.memory_space<vmem>>) target_semaphore(%154 : memref<!tpu.dma_semaphore, #tpu.memory_space<semaphore_mem>>)
    %c6_i32_103 = arith.constant 6 : i32
    %c8_i32_104 = arith.constant 8 : i32
    %155 = arith.addi %0, %c8_i32_104 : i32
    %156 = arith.addi %155, %c6_i32_103 : i32
    %157 = arith.index_cast %156 : i32 to index
    %158 = memref.load %arg1[%157] : memref<32xi32, #tpu.memory_space<smem>>
    %c0_i32_105 = arith.constant 0 : i32
    %159 = arith.maxsi %158, %c0_i32_105 : i32
    %c63_i32_106 = arith.constant 63 : i32
    %160 = arith.minsi %159, %c63_i32_106 : i32
    %c8_i32_107 = arith.constant 8 : i32
    %161 = arith.addi %c8_i32_107, %c6_i32_103 : i32
    %c1_i32_108 = arith.constant 1 : i32
    %c0_i32_109 = arith.constant 0 : i32
    %162 = tpu.memref_slice %arg2[%160, %c0_i32_109] : memref<64x128xf32, #tpu.memory_space<any>> -> memref<1x128xf32, #tpu.memory_space<any>>
    %c0_i32_110 = arith.constant 0 : i32
    %163 = tpu.memref_slice %arg6[%161, %c0_i32_110] : memref<16x128xf32, #tpu.memory_space<vmem>> -> memref<1x128xf32, #tpu.memory_space<vmem>>
    %164 = tpu.memref_slice %arg7[%c1_i32_108] : memref<2x!tpu.dma_semaphore, #tpu.memory_space<semaphore_mem>> -> memref<1x!tpu.dma_semaphore, #tpu.memory_space<semaphore_mem>>
    %165 = tpu.memref_squeeze %164 : memref<1x!tpu.dma_semaphore, #tpu.memory_space<semaphore_mem>> -> memref<!tpu.dma_semaphore, #tpu.memory_space<semaphore_mem>>
    tpu.enqueue_dma source(%162 : memref<1x128xf32, #tpu.memory_space<any>>) target(%163 : memref<1x128xf32, #tpu.memory_space<vmem>>) target_semaphore(%165 : memref<!tpu.dma_semaphore, #tpu.memory_space<semaphore_mem>>)
    %c7_i32_111 = arith.constant 7 : i32
    %c8_i32_112 = arith.constant 8 : i32
    %166 = arith.addi %0, %c8_i32_112 : i32
    %167 = arith.addi %166, %c7_i32_111 : i32
    %168 = arith.index_cast %167 : i32 to index
    %169 = memref.load %arg1[%168] : memref<32xi32, #tpu.memory_space<smem>>
    %c0_i32_113 = arith.constant 0 : i32
    %170 = arith.maxsi %169, %c0_i32_113 : i32
    %c63_i32_114 = arith.constant 63 : i32
    %171 = arith.minsi %170, %c63_i32_114 : i32
    %c8_i32_115 = arith.constant 8 : i32
    %172 = arith.addi %c8_i32_115, %c7_i32_111 : i32
    %c1_i32_116 = arith.constant 1 : i32
    %c0_i32_117 = arith.constant 0 : i32
    %173 = tpu.memref_slice %arg2[%171, %c0_i32_117] : memref<64x128xf32, #tpu.memory_space<any>> -> memref<1x128xf32, #tpu.memory_space<any>>
    %c0_i32_118 = arith.constant 0 : i32
    %174 = tpu.memref_slice %arg6[%172, %c0_i32_118] : memref<16x128xf32, #tpu.memory_space<vmem>> -> memref<1x128xf32, #tpu.memory_space<vmem>>
    %175 = tpu.memref_slice %arg7[%c1_i32_116] : memref<2x!tpu.dma_semaphore, #tpu.memory_space<semaphore_mem>> -> memref<1x!tpu.dma_semaphore, #tpu.memory_space<semaphore_mem>>
    %176 = tpu.memref_squeeze %175 : memref<1x!tpu.dma_semaphore, #tpu.memory_space<semaphore_mem>> -> memref<!tpu.dma_semaphore, #tpu.memory_space<semaphore_mem>>
    tpu.enqueue_dma source(%173 : memref<1x128xf32, #tpu.memory_space<any>>) target(%174 : memref<1x128xf32, #tpu.memory_space<vmem>>) target_semaphore(%176 : memref<!tpu.dma_semaphore, #tpu.memory_space<semaphore_mem>>)
    %c8_i32_119 = arith.constant 8 : i32
    %c0_i32_120 = arith.constant 0 : i32
    %c0_i32_121 = arith.constant 0 : i32
    %177 = arith.addi %c0_i32_121, %c0_i32_120 : i32
    %c0_i32_122 = arith.constant 0 : i32
    %c0_i32_123 = arith.constant 0 : i32
    %c0_i32_124 = arith.constant 0 : i32
    %178 = tpu.memref_slice %arg2[%c0_i32_123, %c0_i32_124] : memref<64x128xf32, #tpu.memory_space<any>> -> memref<1x128xf32, #tpu.memory_space<any>>
    %c0_i32_125 = arith.constant 0 : i32
    %179 = tpu.memref_slice %arg6[%177, %c0_i32_125] : memref<16x128xf32, #tpu.memory_space<vmem>> -> memref<1x128xf32, #tpu.memory_space<vmem>>
    %180 = tpu.memref_slice %arg7[%c0_i32_122] : memref<2x!tpu.dma_semaphore, #tpu.memory_space<semaphore_mem>> -> memref<1x!tpu.dma_semaphore, #tpu.memory_space<semaphore_mem>>
    %181 = tpu.memref_squeeze %180 : memref<1x!tpu.dma_semaphore, #tpu.memory_space<semaphore_mem>> -> memref<!tpu.dma_semaphore, #tpu.memory_space<semaphore_mem>>
    tpu.wait_dma2 semaphore(%181 : memref<!tpu.dma_semaphore, #tpu.memory_space<semaphore_mem>>) src(%178 : memref<1x128xf32, #tpu.memory_space<any>>) dst(%179 : memref<1x128xf32, #tpu.memory_space<vmem>>)
    %c1_i32_126 = arith.constant 1 : i32
    %c0_i32_127 = arith.constant 0 : i32
    %182 = arith.addi %c0_i32_127, %c1_i32_126 : i32
    %c0_i32_128 = arith.constant 0 : i32
    %c0_i32_129 = arith.constant 0 : i32
    %c0_i32_130 = arith.constant 0 : i32
    %183 = tpu.memref_slice %arg2[%c0_i32_129, %c0_i32_130] : memref<64x128xf32, #tpu.memory_space<any>> -> memref<1x128xf32, #tpu.memory_space<any>>
    %c0_i32_131 = arith.constant 0 : i32
    %184 = tpu.memref_slice %arg6[%182, %c0_i32_131] : memref<16x128xf32, #tpu.memory_space<vmem>> -> memref<1x128xf32, #tpu.memory_space<vmem>>
    %185 = tpu.memref_slice %arg7[%c0_i32_128] : memref<2x!tpu.dma_semaphore, #tpu.memory_space<semaphore_mem>> -> memref<1x!tpu.dma_semaphore, #tpu.memory_space<semaphore_mem>>
    %186 = tpu.memref_squeeze %185 : memref<1x!tpu.dma_semaphore, #tpu.memory_space<semaphore_mem>> -> memref<!tpu.dma_semaphore, #tpu.memory_space<semaphore_mem>>
    tpu.wait_dma2 semaphore(%186 : memref<!tpu.dma_semaphore, #tpu.memory_space<semaphore_mem>>) src(%183 : memref<1x128xf32, #tpu.memory_space<any>>) dst(%184 : memref<1x128xf32, #tpu.memory_space<vmem>>)
    %c2_i32_132 = arith.constant 2 : i32
    %c0_i32_133 = arith.constant 0 : i32
    %187 = arith.addi %c0_i32_133, %c2_i32_132 : i32
    %c0_i32_134 = arith.constant 0 : i32
    %c0_i32_135 = arith.constant 0 : i32
    %c0_i32_136 = arith.constant 0 : i32
    %188 = tpu.memref_slice %arg2[%c0_i32_135, %c0_i32_136] : memref<64x128xf32, #tpu.memory_space<any>> -> memref<1x128xf32, #tpu.memory_space<any>>
    %c0_i32_137 = arith.constant 0 : i32
    %189 = tpu.memref_slice %arg6[%187, %c0_i32_137] : memref<16x128xf32, #tpu.memory_space<vmem>> -> memref<1x128xf32, #tpu.memory_space<vmem>>
    %190 = tpu.memref_slice %arg7[%c0_i32_134] : memref<2x!tpu.dma_semaphore, #tpu.memory_space<semaphore_mem>> -> memref<1x!tpu.dma_semaphore, #tpu.memory_space<semaphore_mem>>
    %191 = tpu.memref_squeeze %190 : memref<1x!tpu.dma_semaphore, #tpu.memory_space<semaphore_mem>> -> memref<!tpu.dma_semaphore, #tpu.memory_space<semaphore_mem>>
    tpu.wait_dma2 semaphore(%191 : memref<!tpu.dma_semaphore, #tpu.memory_space<semaphore_mem>>) src(%188 : memref<1x128xf32, #tpu.memory_space<any>>) dst(%189 : memref<1x128xf32, #tpu.memory_space<vmem>>)
    %c3_i32_138 = arith.constant 3 : i32
    %c0_i32_139 = arith.constant 0 : i32
    %192 = arith.addi %c0_i32_139, %c3_i32_138 : i32
    %c0_i32_140 = arith.constant 0 : i32
    %c0_i32_141 = arith.constant 0 : i32
    %c0_i32_142 = arith.constant 0 : i32
    %193 = tpu.memref_slice %arg2[%c0_i32_141, %c0_i32_142] : memref<64x128xf32, #tpu.memory_space<any>> -> memref<1x128xf32, #tpu.memory_space<any>>
    %c0_i32_143 = arith.constant 0 : i32
    %194 = tpu.memref_slice %arg6[%192, %c0_i32_143] : memref<16x128xf32, #tpu.memory_space<vmem>> -> memref<1x128xf32, #tpu.memory_space<vmem>>
    %195 = tpu.memref_slice %arg7[%c0_i32_140] : memref<2x!tpu.dma_semaphore, #tpu.memory_space<semaphore_mem>> -> memref<1x!tpu.dma_semaphore, #tpu.memory_space<semaphore_mem>>
    %196 = tpu.memref_squeeze %195 : memref<1x!tpu.dma_semaphore, #tpu.memory_space<semaphore_mem>> -> memref<!tpu.dma_semaphore, #tpu.memory_space<semaphore_mem>>
    tpu.wait_dma2 semaphore(%196 : memref<!tpu.dma_semaphore, #tpu.memory_space<semaphore_mem>>) src(%193 : memref<1x128xf32, #tpu.memory_space<any>>) dst(%194 : memref<1x128xf32, #tpu.memory_space<vmem>>)
    %c4_i32_144 = arith.constant 4 : i32
    %c0_i32_145 = arith.constant 0 : i32
    %197 = arith.addi %c0_i32_145, %c4_i32_144 : i32
    %c0_i32_146 = arith.constant 0 : i32
    %c0_i32_147 = arith.constant 0 : i32
    %c0_i32_148 = arith.constant 0 : i32
    %198 = tpu.memref_slice %arg2[%c0_i32_147, %c0_i32_148] : memref<64x128xf32, #tpu.memory_space<any>> -> memref<1x128xf32, #tpu.memory_space<any>>
    %c0_i32_149 = arith.constant 0 : i32
    %199 = tpu.memref_slice %arg6[%197, %c0_i32_149] : memref<16x128xf32, #tpu.memory_space<vmem>> -> memref<1x128xf32, #tpu.memory_space<vmem>>
    %200 = tpu.memref_slice %arg7[%c0_i32_146] : memref<2x!tpu.dma_semaphore, #tpu.memory_space<semaphore_mem>> -> memref<1x!tpu.dma_semaphore, #tpu.memory_space<semaphore_mem>>
    %201 = tpu.memref_squeeze %200 : memref<1x!tpu.dma_semaphore, #tpu.memory_space<semaphore_mem>> -> memref<!tpu.dma_semaphore, #tpu.memory_space<semaphore_mem>>
    tpu.wait_dma2 semaphore(%201 : memref<!tpu.dma_semaphore, #tpu.memory_space<semaphore_mem>>) src(%198 : memref<1x128xf32, #tpu.memory_space<any>>) dst(%199 : memref<1x128xf32, #tpu.memory_space<vmem>>)
    %c5_i32_150 = arith.constant 5 : i32
    %c0_i32_151 = arith.constant 0 : i32
    %202 = arith.addi %c0_i32_151, %c5_i32_150 : i32
    %c0_i32_152 = arith.constant 0 : i32
    %c0_i32_153 = arith.constant 0 : i32
    %c0_i32_154 = arith.constant 0 : i32
    %203 = tpu.memref_slice %arg2[%c0_i32_153, %c0_i32_154] : memref<64x128xf32, #tpu.memory_space<any>> -> memref<1x128xf32, #tpu.memory_space<any>>
    %c0_i32_155 = arith.constant 0 : i32
    %204 = tpu.memref_slice %arg6[%202, %c0_i32_155] : memref<16x128xf32, #tpu.memory_space<vmem>> -> memref<1x128xf32, #tpu.memory_space<vmem>>
    %205 = tpu.memref_slice %arg7[%c0_i32_152] : memref<2x!tpu.dma_semaphore, #tpu.memory_space<semaphore_mem>> -> memref<1x!tpu.dma_semaphore, #tpu.memory_space<semaphore_mem>>
    %206 = tpu.memref_squeeze %205 : memref<1x!tpu.dma_semaphore, #tpu.memory_space<semaphore_mem>> -> memref<!tpu.dma_semaphore, #tpu.memory_space<semaphore_mem>>
    tpu.wait_dma2 semaphore(%206 : memref<!tpu.dma_semaphore, #tpu.memory_space<semaphore_mem>>) src(%203 : memref<1x128xf32, #tpu.memory_space<any>>) dst(%204 : memref<1x128xf32, #tpu.memory_space<vmem>>)
    %c6_i32_156 = arith.constant 6 : i32
    %c0_i32_157 = arith.constant 0 : i32
    %207 = arith.addi %c0_i32_157, %c6_i32_156 : i32
    %c0_i32_158 = arith.constant 0 : i32
    %c0_i32_159 = arith.constant 0 : i32
    %c0_i32_160 = arith.constant 0 : i32
    %208 = tpu.memref_slice %arg2[%c0_i32_159, %c0_i32_160] : memref<64x128xf32, #tpu.memory_space<any>> -> memref<1x128xf32, #tpu.memory_space<any>>
    %c0_i32_161 = arith.constant 0 : i32
    %209 = tpu.memref_slice %arg6[%207, %c0_i32_161] : memref<16x128xf32, #tpu.memory_space<vmem>> -> memref<1x128xf32, #tpu.memory_space<vmem>>
    %210 = tpu.memref_slice %arg7[%c0_i32_158] : memref<2x!tpu.dma_semaphore, #tpu.memory_space<semaphore_mem>> -> memref<1x!tpu.dma_semaphore, #tpu.memory_space<semaphore_mem>>
    %211 = tpu.memref_squeeze %210 : memref<1x!tpu.dma_semaphore, #tpu.memory_space<semaphore_mem>> -> memref<!tpu.dma_semaphore, #tpu.memory_space<semaphore_mem>>
    tpu.wait_dma2 semaphore(%211 : memref<!tpu.dma_semaphore, #tpu.memory_space<semaphore_mem>>) src(%208 : memref<1x128xf32, #tpu.memory_space<any>>) dst(%209 : memref<1x128xf32, #tpu.memory_space<vmem>>)
    %c7_i32_162 = arith.constant 7 : i32
    %c0_i32_163 = arith.constant 0 : i32
    %212 = arith.addi %c0_i32_163, %c7_i32_162 : i32
    %c0_i32_164 = arith.constant 0 : i32
    %c0_i32_165 = arith.constant 0 : i32
    %c0_i32_166 = arith.constant 0 : i32
    %213 = tpu.memref_slice %arg2[%c0_i32_165, %c0_i32_166] : memref<64x128xf32, #tpu.memory_space<any>> -> memref<1x128xf32, #tpu.memory_space<any>>
    %c0_i32_167 = arith.constant 0 : i32
    %214 = tpu.memref_slice %arg6[%212, %c0_i32_167] : memref<16x128xf32, #tpu.memory_space<vmem>> -> memref<1x128xf32, #tpu.memory_space<vmem>>
    %215 = tpu.memref_slice %arg7[%c0_i32_164] : memref<2x!tpu.dma_semaphore, #tpu.memory_space<semaphore_mem>> -> memref<1x!tpu.dma_semaphore, #tpu.memory_space<semaphore_mem>>
    %216 = tpu.memref_squeeze %215 : memref<1x!tpu.dma_semaphore, #tpu.memory_space<semaphore_mem>> -> memref<!tpu.dma_semaphore, #tpu.memory_space<semaphore_mem>>
    tpu.wait_dma2 semaphore(%216 : memref<!tpu.dma_semaphore, #tpu.memory_space<semaphore_mem>>) src(%213 : memref<1x128xf32, #tpu.memory_space<any>>) dst(%214 : memref<1x128xf32, #tpu.memory_space<vmem>>)
    %c8_i32_168 = arith.constant 8 : i32
    %c0 = arith.constant 0 : index
    %c0_169 = arith.constant 0 : index
    %217 = vector.load %arg6[%c0, %c0_169] : memref<16x128xf32, #tpu.memory_space<vmem>>, vector<8x128xf32>
    %218 = arith.truncf %217 : vector<8x128xf32> to vector<8x128xbf16>
    %c0_170 = arith.constant 0 : index
    %c0_171 = arith.constant 0 : index
    %219 = vector.load %arg3[%c0_170, %c0_171] : memref<128x128xbf16, #tpu.memory_space<vmem>>, vector<128x128xbf16>
    %cst = arith.constant dense<0.000000e+00> : vector<8x128xf32>
    %220 = tpu.matmul %218, %219, %cst {dimension_numbers = #tpu.dot_dimension_numbers<[1], [0], [0], [1], [0, 0, 1, 1], [], []>} : vector<8x128xbf16>, vector<128x128xbf16>, vector<8x128xf32> -> vector<8x128xf32>
    %c0_172 = arith.constant 0 : index
    %c0_173 = arith.constant 0 : index
    %221 = vector.load %arg4[%c0_172, %c0_173] : memref<1x128xf32, #tpu.memory_space<vmem>>, vector<1x128xf32>
    %222 = vector.broadcast %221 : vector<1x128xf32> to vector<8x128xf32>
    %223 = arith.addf %220, %222 : vector<8x128xf32>
    %c0_174 = arith.constant 0 : index
    %c0_175 = arith.constant 0 : index
    %224 = vector.load %arg5[%c0_174, %c0_175] : memref<16x128xf32, #tpu.memory_space<vmem>>, vector<8x128xf32>
    tpu.vector_store %arg5[%c0_174, %c0_175], %223 {strides = array<i32>} : memref<16x128xf32, #tpu.memory_space<vmem>>, vector<8x128xf32>,
    %c0_i32_176 = arith.constant 0 : i32
    %c8_i32_177 = arith.constant 8 : i32
    %225 = arith.addi %c8_i32_177, %c0_i32_176 : i32
    %c1_i32_178 = arith.constant 1 : i32
    %c0_i32_179 = arith.constant 0 : i32
    %c0_i32_180 = arith.constant 0 : i32
    %226 = tpu.memref_slice %arg2[%c0_i32_179, %c0_i32_180] : memref<64x128xf32, #tpu.memory_space<any>> -> memref<1x128xf32, #tpu.memory_space<any>>
    %c0_i32_181 = arith.constant 0 : i32
    %227 = tpu.memref_slice %arg6[%225, %c0_i32_181] : memref<16x128xf32, #tpu.memory_space<vmem>> -> memref<1x128xf32, #tpu.memory_space<vmem>>
    %228 = tpu.memref_slice %arg7[%c1_i32_178] : memref<2x!tpu.dma_semaphore, #tpu.memory_space<semaphore_mem>> -> memref<1x!tpu.dma_semaphore, #tpu.memory_space<semaphore_mem>>
    %229 = tpu.memref_squeeze %228 : memref<1x!tpu.dma_semaphore, #tpu.memory_space<semaphore_mem>> -> memref<!tpu.dma_semaphore, #tpu.memory_space<semaphore_mem>>
    tpu.wait_dma2 semaphore(%229 : memref<!tpu.dma_semaphore, #tpu.memory_space<semaphore_mem>>) src(%226 : memref<1x128xf32, #tpu.memory_space<any>>) dst(%227 : memref<1x128xf32, #tpu.memory_space<vmem>>)
    %c1_i32_182 = arith.constant 1 : i32
    %c8_i32_183 = arith.constant 8 : i32
    %230 = arith.addi %c8_i32_183, %c1_i32_182 : i32
    %c1_i32_184 = arith.constant 1 : i32
    %c0_i32_185 = arith.constant 0 : i32
    %c0_i32_186 = arith.constant 0 : i32
    %231 = tpu.memref_slice %arg2[%c0_i32_185, %c0_i32_186] : memref<64x128xf32, #tpu.memory_space<any>> -> memref<1x128xf32, #tpu.memory_space<any>>
    %c0_i32_187 = arith.constant 0 : i32
    %232 = tpu.memref_slice %arg6[%230, %c0_i32_187] : memref<16x128xf32, #tpu.memory_space<vmem>> -> memref<1x128xf32, #tpu.memory_space<vmem>>
    %233 = tpu.memref_slice %arg7[%c1_i32_184] : memref<2x!tpu.dma_semaphore, #tpu.memory_space<semaphore_mem>> -> memref<1x!tpu.dma_semaphore, #tpu.memory_space<semaphore_mem>>
    %234 = tpu.memref_squeeze %233 : memref<1x!tpu.dma_semaphore, #tpu.memory_space<semaphore_mem>> -> memref<!tpu.dma_semaphore, #tpu.memory_space<semaphore_mem>>
    tpu.wait_dma2 semaphore(%234 : memref<!tpu.dma_semaphore, #tpu.memory_space<semaphore_mem>>) src(%231 : memref<1x128xf32, #tpu.memory_space<any>>) dst(%232 : memref<1x128xf32, #tpu.memory_space<vmem>>)
    %c2_i32_188 = arith.constant 2 : i32
    %c8_i32_189 = arith.constant 8 : i32
    %235 = arith.addi %c8_i32_189, %c2_i32_188 : i32
    %c1_i32_190 = arith.constant 1 : i32
    %c0_i32_191 = arith.constant 0 : i32
    %c0_i32_192 = arith.constant 0 : i32
    %236 = tpu.memref_slice %arg2[%c0_i32_191, %c0_i32_192] : memref<64x128xf32, #tpu.memory_space<any>> -> memref<1x128xf32, #tpu.memory_space<any>>
    %c0_i32_193 = arith.constant 0 : i32
    %237 = tpu.memref_slice %arg6[%235, %c0_i32_193] : memref<16x128xf32, #tpu.memory_space<vmem>> -> memref<1x128xf32, #tpu.memory_space<vmem>>
    %238 = tpu.memref_slice %arg7[%c1_i32_190] : memref<2x!tpu.dma_semaphore, #tpu.memory_space<semaphore_mem>> -> memref<1x!tpu.dma_semaphore, #tpu.memory_space<semaphore_mem>>
    %239 = tpu.memref_squeeze %238 : memref<1x!tpu.dma_semaphore, #tpu.memory_space<semaphore_mem>> -> memref<!tpu.dma_semaphore, #tpu.memory_space<semaphore_mem>>
    tpu.wait_dma2 semaphore(%239 : memref<!tpu.dma_semaphore, #tpu.memory_space<semaphore_mem>>) src(%236 : memref<1x128xf32, #tpu.memory_space<any>>) dst(%237 : memref<1x128xf32, #tpu.memory_space<vmem>>)
    %c3_i32_194 = arith.constant 3 : i32
    %c8_i32_195 = arith.constant 8 : i32
    %240 = arith.addi %c8_i32_195, %c3_i32_194 : i32
    %c1_i32_196 = arith.constant 1 : i32
    %c0_i32_197 = arith.constant 0 : i32
    %c0_i32_198 = arith.constant 0 : i32
    %241 = tpu.memref_slice %arg2[%c0_i32_197, %c0_i32_198] : memref<64x128xf32, #tpu.memory_space<any>> -> memref<1x128xf32, #tpu.memory_space<any>>
    %c0_i32_199 = arith.constant 0 : i32
    %242 = tpu.memref_slice %arg6[%240, %c0_i32_199] : memref<16x128xf32, #tpu.memory_space<vmem>> -> memref<1x128xf32, #tpu.memory_space<vmem>>
    %243 = tpu.memref_slice %arg7[%c1_i32_196] : memref<2x!tpu.dma_semaphore, #tpu.memory_space<semaphore_mem>> -> memref<1x!tpu.dma_semaphore, #tpu.memory_space<semaphore_mem>>
    %244 = tpu.memref_squeeze %243 : memref<1x!tpu.dma_semaphore, #tpu.memory_space<semaphore_mem>> -> memref<!tpu.dma_semaphore, #tpu.memory_space<semaphore_mem>>
    tpu.wait_dma2 semaphore(%244 : memref<!tpu.dma_semaphore, #tpu.memory_space<semaphore_mem>>) src(%241 : memref<1x128xf32, #tpu.memory_space<any>>) dst(%242 : memref<1x128xf32, #tpu.memory_space<vmem>>)
    %c4_i32_200 = arith.constant 4 : i32
    %c8_i32_201 = arith.constant 8 : i32
    %245 = arith.addi %c8_i32_201, %c4_i32_200 : i32
    %c1_i32_202 = arith.constant 1 : i32
    %c0_i32_203 = arith.constant 0 : i32
    %c0_i32_204 = arith.constant 0 : i32
    %246 = tpu.memref_slice %arg2[%c0_i32_203, %c0_i32_204] : memref<64x128xf32, #tpu.memory_space<any>> -> memref<1x128xf32, #tpu.memory_space<any>>
    %c0_i32_205 = arith.constant 0 : i32
    %247 = tpu.memref_slice %arg6[%245, %c0_i32_205] : memref<16x128xf32, #tpu.memory_space<vmem>> -> memref<1x128xf32, #tpu.memory_space<vmem>>
    %248 = tpu.memref_slice %arg7[%c1_i32_202] : memref<2x!tpu.dma_semaphore, #tpu.memory_space<semaphore_mem>> -> memref<1x!tpu.dma_semaphore, #tpu.memory_space<semaphore_mem>>
    %249 = tpu.memref_squeeze %248 : memref<1x!tpu.dma_semaphore, #tpu.memory_space<semaphore_mem>> -> memref<!tpu.dma_semaphore, #tpu.memory_space<semaphore_mem>>
    tpu.wait_dma2 semaphore(%249 : memref<!tpu.dma_semaphore, #tpu.memory_space<semaphore_mem>>) src(%246 : memref<1x128xf32, #tpu.memory_space<any>>) dst(%247 : memref<1x128xf32, #tpu.memory_space<vmem>>)
    %c5_i32_206 = arith.constant 5 : i32
    %c8_i32_207 = arith.constant 8 : i32
    %250 = arith.addi %c8_i32_207, %c5_i32_206 : i32
    %c1_i32_208 = arith.constant 1 : i32
    %c0_i32_209 = arith.constant 0 : i32
    %c0_i32_210 = arith.constant 0 : i32
    %251 = tpu.memref_slice %arg2[%c0_i32_209, %c0_i32_210] : memref<64x128xf32, #tpu.memory_space<any>> -> memref<1x128xf32, #tpu.memory_space<any>>
    %c0_i32_211 = arith.constant 0 : i32
    %252 = tpu.memref_slice %arg6[%250, %c0_i32_211] : memref<16x128xf32, #tpu.memory_space<vmem>> -> memref<1x128xf32, #tpu.memory_space<vmem>>
    %253 = tpu.memref_slice %arg7[%c1_i32_208] : memref<2x!tpu.dma_semaphore, #tpu.memory_space<semaphore_mem>> -> memref<1x!tpu.dma_semaphore, #tpu.memory_space<semaphore_mem>>
    %254 = tpu.memref_squeeze %253 : memref<1x!tpu.dma_semaphore, #tpu.memory_space<semaphore_mem>> -> memref<!tpu.dma_semaphore, #tpu.memory_space<semaphore_mem>>
    tpu.wait_dma2 semaphore(%254 : memref<!tpu.dma_semaphore, #tpu.memory_space<semaphore_mem>>) src(%251 : memref<1x128xf32, #tpu.memory_space<any>>) dst(%252 : memref<1x128xf32, #tpu.memory_space<vmem>>)
    %c6_i32_212 = arith.constant 6 : i32
    %c8_i32_213 = arith.constant 8 : i32
    %255 = arith.addi %c8_i32_213, %c6_i32_212 : i32
    %c1_i32_214 = arith.constant 1 : i32
    %c0_i32_215 = arith.constant 0 : i32
    %c0_i32_216 = arith.constant 0 : i32
    %256 = tpu.memref_slice %arg2[%c0_i32_215, %c0_i32_216] : memref<64x128xf32, #tpu.memory_space<any>> -> memref<1x128xf32, #tpu.memory_space<any>>
    %c0_i32_217 = arith.constant 0 : i32
    %257 = tpu.memref_slice %arg6[%255, %c0_i32_217] : memref<16x128xf32, #tpu.memory_space<vmem>> -> memref<1x128xf32, #tpu.memory_space<vmem>>
    %258 = tpu.memref_slice %arg7[%c1_i32_214] : memref<2x!tpu.dma_semaphore, #tpu.memory_space<semaphore_mem>> -> memref<1x!tpu.dma_semaphore, #tpu.memory_space<semaphore_mem>>
    %259 = tpu.memref_squeeze %258 : memref<1x!tpu.dma_semaphore, #tpu.memory_space<semaphore_mem>> -> memref<!tpu.dma_semaphore, #tpu.memory_space<semaphore_mem>>
    tpu.wait_dma2 semaphore(%259 : memref<!tpu.dma_semaphore, #tpu.memory_space<semaphore_mem>>) src(%256 : memref<1x128xf32, #tpu.memory_space<any>>) dst(%257 : memref<1x128xf32, #tpu.memory_space<vmem>>)
    %c7_i32_218 = arith.constant 7 : i32
    %c8_i32_219 = arith.constant 8 : i32
    %260 = arith.addi %c8_i32_219, %c7_i32_218 : i32
    %c1_i32_220 = arith.constant 1 : i32
    %c0_i32_221 = arith.constant 0 : i32
    %c0_i32_222 = arith.constant 0 : i32
    %261 = tpu.memref_slice %arg2[%c0_i32_221, %c0_i32_222] : memref<64x128xf32, #tpu.memory_space<any>> -> memref<1x128xf32, #tpu.memory_space<any>>
    %c0_i32_223 = arith.constant 0 : i32
    %262 = tpu.memref_slice %arg6[%260, %c0_i32_223] : memref<16x128xf32, #tpu.memory_space<vmem>> -> memref<1x128xf32, #tpu.memory_space<vmem>>
    %263 = tpu.memref_slice %arg7[%c1_i32_220] : memref<2x!tpu.dma_semaphore, #tpu.memory_space<semaphore_mem>> -> memref<1x!tpu.dma_semaphore, #tpu.memory_space<semaphore_mem>>
    %264 = tpu.memref_squeeze %263 : memref<1x!tpu.dma_semaphore, #tpu.memory_space<semaphore_mem>> -> memref<!tpu.dma_semaphore, #tpu.memory_space<semaphore_mem>>
    tpu.wait_dma2 semaphore(%264 : memref<!tpu.dma_semaphore, #tpu.memory_space<semaphore_mem>>) src(%261 : memref<1x128xf32, #tpu.memory_space<any>>) dst(%262 : memref<1x128xf32, #tpu.memory_space<vmem>>)
    %c8_i32_224 = arith.constant 8 : i32
    %c8 = arith.constant 8 : index
    %c0_225 = arith.constant 0 : index
    %265 = vector.load %arg6[%c8, %c0_225] : memref<16x128xf32, #tpu.memory_space<vmem>>, vector<8x128xf32>
    %266 = arith.truncf %265 : vector<8x128xf32> to vector<8x128xbf16>
    %c0_226 = arith.constant 0 : index
    %c0_227 = arith.constant 0 : index
    %267 = vector.load %arg3[%c0_226, %c0_227] : memref<128x128xbf16, #tpu.memory_space<vmem>>, vector<128x128xbf16>
    %cst_228 = arith.constant dense<0.000000e+00> : vector<8x128xf32>
    %268 = tpu.matmul %266, %267, %cst_228 {dimension_numbers = #tpu.dot_dimension_numbers<[1], [0], [0], [1], [0, 0, 1, 1], [], []>} : vector<8x128xbf16>, vector<128x128xbf16>, vector<8x128xf32> -> vector<8x128xf32>
    %c0_229 = arith.constant 0 : index
    %c0_230 = arith.constant 0 : index
    %269 = vector.load %arg4[%c0_229, %c0_230] : memref<1x128xf32, #tpu.memory_space<vmem>>, vector<1x128xf32>
    %270 = vector.broadcast %269 : vector<1x128xf32> to vector<8x128xf32>
    %271 = arith.addf %268, %270 : vector<8x128xf32>
    %c8_231 = arith.constant 8 : index
    %c0_232 = arith.constant 0 : index
    %272 = vector.load %arg5[%c8_231, %c0_232] : memref<16x128xf32, #tpu.memory_space<vmem>>, vector<8x128xf32>
    tpu.vector_store %arg5[%c8_231, %c0_232], %271 {strides = array<i32>} : memref<16x128xf32, #tpu.memory_space<vmem>>, vector<8x128xf32>,
    return
  }
  func.func @transform_1(%arg0: i32, %arg1: memref<32xi32, #tpu.memory_space<smem>>) -> (i32, i32) {
    %c0_i32 = arith.constant 0 : i32
    %c0_i32_0 = arith.constant 0 : i32
    %c0_i32_1 = arith.constant 0 : i32
    return %c0_i32, %c0_i32_0 : i32, i32
  }
  func.func @transform_2(%arg0: i32, %arg1: memref<32xi32, #tpu.memory_space<smem>>) -> (i32, i32) {
    %c0_i32 = arith.constant 0 : i32
    %c0_i32_0 = arith.constant 0 : i32
    %c0_i32_1 = arith.constant 0 : i32
    return %c0_i32, %c0_i32_0 : i32, i32
  }
  func.func @transform_3(%arg0: i32, %arg1: memref<32xi32, #tpu.memory_space<smem>>) -> (i32, i32) {
    %c0_i32 = arith.constant 0 : i32
    %c0_i32_0 = arith.constant 0 : i32
    return %arg0, %c0_i32 : i32, i32
  }
}

</mosaic_0001>

<llo_original>
// kernel: tpu_custom_call.1
$region0: #{tpu_custom_call.1}
  #allocation0 [shape = 'u32[]', space=smem, size = 0x4, offset = 0x4, fixed_abs, tag = 'smem constant byte address 0x4 - core index']
  #allocation1 [shape = 'u32[144,128]{1,0:T(1,128)}', space=vmem, size = 0x12000, scoped, tag = 'internal scratch']
  #allocation2 [shape = 'f32[16,128]{1,0:T(8,128)}', space=vmem, size = 0x2000, scoped, tag = 'scratch operand']
  #allocation3 [shape = 's32[2]{0}', space=sflag, size = 0x8, scoped, tag = 'scratch operand']
  #allocation4 [shape = 's32[1]{0}', space=sflag, size = 0x4, scoped, tag = 'scoped memory for tpu_custom_call.1']
  #allocation5 [shape = 'u8[512]{0}', space=smem, size = 0x200, scoped, tag = 'prefetched SMEM operand 0']
  #allocation10 [shape = 's32[]', space=sflag, size = 0x4, offset = 0, fixed_abs, tag = 'sflag constant byte address 0x0 - dummy sync flag']
  #allocation11 [shape = 's32[]', space=sflag, size = 0x4, offset = 0, fixed_abs, tag = 'sflag constant byte address 0x0 - dummy sync flag']
  #allocation12 [shape = 'u32[]', space=smem, size = 0x4, offset = 0x44, fixed_abs, tag = 'smem constant byte address 0x44 - assertion arg 0']
  #allocation13 [shape = 'u32[]', space=smem, size = 0x4, offset = 0x48, fixed_abs, tag = 'smem constant byte address 0x48 - assertion arg 1']
  #allocation14 [shape = 's32[]', space=sflag, size = 0x4, offset = 0, fixed_abs, tag = 'sflag constant byte address 0x0 - dummy sync flag']
  #allocation15 [shape = 's32[]', space=sflag, size = 0x4, offset = 0, fixed_abs, tag = 'sflag constant byte address 0x0 - dummy sync flag']
  #allocation16 [shape = 's32[]', space=sflag, size = 0x4, offset = 0, fixed_abs, tag = 'sflag constant byte address 0x0 - dummy sync flag']
  #allocation17 [shape = 's32[]', space=sflag, size = 0x4, offset = 0, fixed_abs, tag = 'sflag constant byte address 0x0 - dummy sync flag']
  #allocation18 [shape = 's32[]', space=sflag, size = 0x4, offset = 0, fixed_abs, tag = 'sflag constant byte address 0x0 - dummy sync flag']
  #allocation19 [shape = 's32[]', space=sflag, size = 0x4, offset = 0, fixed_abs, tag = 'sflag constant byte address 0x0 - dummy sync flag']
  #allocation20 [shape = 's32[]', space=sflag, size = 0x4, offset = 0, fixed_abs, tag = 'sflag constant byte address 0x0 - dummy sync flag']
  #allocation21 [shape = 's32[]', space=sflag, size = 0x4, offset = 0, fixed_abs, tag = 'sflag constant byte address 0x0 - dummy sync flag']
  #allocation22 [shape = 's32[]', space=sflag, size = 0x4, offset = 0, fixed_abs, tag = 'sflag constant byte address 0x0 - dummy sync flag']
  #allocation23 [shape = 's32[]', space=sflag, size = 0x4, offset = 0, fixed_abs, tag = 'sflag constant byte address 0x0 - dummy sync flag']
  #allocation24 [shape = 's32[]', space=sflag, size = 0x4, offset = 0, fixed_abs, tag = 'sflag constant byte address 0x0 - dummy sync flag']
  #allocation25 [shape = 's32[]', space=sflag, size = 0x4, offset = 0, fixed_abs, tag = 'sflag constant byte address 0x0 - dummy sync flag']
  #allocation26 [shape = 's32[]', space=sflag, size = 0x4, offset = 0, fixed_abs, tag = 'sflag constant byte address 0x0 - dummy sync flag']
  #allocation27 [shape = 's32[]', space=sflag, size = 0x4, offset = 0, fixed_abs, tag = 'sflag constant byte address 0x0 - dummy sync flag']
  #allocation28 [shape = 's32[]', space=sflag, size = 0x4, offset = 0, fixed_abs, tag = 'sflag constant byte address 0x0 - dummy sync flag']
  #allocation29 [shape = 's32[]', space=sflag, size = 0x4, offset = 0, fixed_abs, tag = 'sflag constant byte address 0x0 - dummy sync flag']
  #allocation30 [shape = 's32[]', space=sflag, size = 0x4, offset = 0, fixed_abs, tag = 'sflag constant byte address 0x0 - dummy sync flag']
  #allocation31 [shape = 's32[]', space=sflag, size = 0x4, offset = 0, fixed_abs, tag = 'sflag constant byte address 0x0 - dummy sync flag']
  #allocation32 [shape = 's32[]', space=sflag, size = 0x4, offset = 0, fixed_abs, tag = 'sflag constant byte address 0x0 - dummy sync flag']
  #allocation33 [shape = 's32[]', space=sflag, size = 0x4, offset = 0, fixed_abs, tag = 'sflag constant byte address 0x0 - dummy sync flag']
  #allocation34 [shape = 's32[]', space=sflag, size = 0x4, offset = 0, fixed_abs, tag = 'sflag constant byte address 0x0 - dummy sync flag']
  #allocation35 [shape = 's32[]', space=sflag, size = 0x4, offset = 0, fixed_abs, tag = 'sflag constant byte address 0x0 - dummy sync flag']
  #allocation36 [shape = 's32[]', space=sflag, size = 0x4, offset = 0, fixed_abs, tag = 'sflag constant byte address 0x0 - dummy sync flag']
  #allocation37 [shape = 's32[]', space=sflag, size = 0x4, offset = 0, fixed_abs, tag = 'sflag constant byte address 0x0 - dummy sync flag']
  #allocation38 [shape = 's32[]', space=sflag, size = 0x4, offset = 0, fixed_abs, tag = 'sflag constant byte address 0x0 - dummy sync flag']
  #allocation39 [shape = 's32[]', space=sflag, size = 0x4, offset = 0, fixed_abs, tag = 'sflag constant byte address 0x0 - dummy sync flag']
  #allocation40 [shape = 's32[]', space=sflag, size = 0x4, offset = 0, fixed_abs, tag = 'sflag constant byte address 0x0 - dummy sync flag']
  #allocation41 [shape = 's32[]', space=sflag, size = 0x4, offset = 0, fixed_abs, tag = 'sflag constant byte address 0x0 - dummy sync flag']
  #allocation42 [shape = 's32[]', space=sflag, size = 0x4, offset = 0, fixed_abs, tag = 'sflag constant byte address 0x0 - dummy sync flag']
  #allocation43 [shape = 's32[]', space=sflag, size = 0x4, offset = 0, fixed_abs, tag = 'sflag constant byte address 0x0 - dummy sync flag']
  %s0 = inlined_call_operand.hbm [shape: s32[32], index: 0, kind: input, shape index: {}]
  %s1 = inlined_call_operand.hbm [shape: f32[64,128], index: 1, kind: input, shape index: {}]
  %s2 = inlined_call_operand.hbm [shape: bf16[128,128], index: 2, kind: input, shape index: {}]
  %s3 = inlined_call_operand.vmem [shape: f32[1,128], index: 3, kind: input, shape index: {}]
  %s4 = inlined_call_operand.hbm [shape: f32[32,128], index: 4, kind: output, shape index: {}]
  %s5 = sld [smem:[#allocation0]]
  $region109: #{tpu_custom_call.1} parent=0
    _
  %s7 = ssub.s32 1, %s5
  %s8 = scalar_select 0, %s7, %s5
  %10 = dma.hbm_to_smem %s0, 16, [#allocation5], [#allocation4]
  %11 = dma.done [#allocation4], 16
  %12 = sfence
  $region1: #{tpu_custom_call.1} parent=0
    #allocation6 [shape = 'u8[32768]{0}', space=vmem, size = 0x8000, scoped, tag = 'input window, operand 2, single buffered']
    #allocation7 [shape = 's32[2]{0}', space=sflag, size = 0x8, scoped, tag = 'scoped memory for tpu_custom_call.1']
    #allocation8 [shape = 's32[2]{0}', space=sflag, size = 0x8, scoped, tag = 'scoped memory for tpu_custom_call.1']
    #allocation9 [shape = 'u8[16384]{0}', space=vmem, size = 0x4000, scoped, tag = 'output window, operand 0']
    %13 = vsyncpa [#allocation7], 0
    %14 = vsyncpa [#allocation8], 0
    %s15 = scalar_lea.sflag [#allocation8], 1
    %16 = vsyncpa %s15, 0
    loop: start=0, step=1, limit=4
    $region2: #{tpu_custom_call.1} parent=1 // loop_pre_header
      _
    $region3: #{tpu_custom_call.1} parent=1 // loop_header
      %s18 = sphi 0, %s22
      %p19 = scmp.ge.s32.totalorder %s18, 4
      %s26 = sphi 0, %s26
      %s28 = sphi 0, %s26
      %s29 = sphi 0, %s28
      %s43 = sphi 0, %s29
      %s47 = sphi 0, %s47
      %s49 = sphi 0, %s47
      %s50 = sphi 0, %s49
      %s64 = sphi 0, %s50
      %s70 = sphi 0, %s72
      %s73 = sphi 0, %s70
      %s74 = sphi 0, %s73
      %s90 = sphi 0, %s74
    $region4: #{tpu_custom_call.1} parent=1 // loop_header_branch
      %21 = sbr.rel (%p19) target = $region8
    $region5: #{tpu_custom_call.1} parent=1 // loop_body
      %s23 = ssub.s32 %s18, 1
      %s24 = ssub.s32 %s18, 2
      %s25 = sadd.s32 %s18, 1
      %s27 = sadd.s32 %s26, 1
      %p30 = scmp.eq.s32.totalorder %s18, 1
      %p31 = scmp.ne.s32.totalorder %s26, %s28
      %p32 = scmp.eq.s32.totalorder %s18, 0
      %p33 = por %p31, %p32
      %p34 = scmp.ne.s32.totalorder %s26, %s28
      %p35 = scmp.eq.s32.totalorder %s23, 1
      %p36 = por %p34, %p35
      %p37 = scmp.ne.s32.totalorder %s28, %s29
      %p38 = scmp.eq.s32.totalorder %s23, 0
      %p39 = por %p37, %p38
      %p40 = scmp.ne.s32.totalorder %s28, %s29
      %p41 = scmp.eq.s32.totalorder %s24, 1
      %p42 = por %p40, %p41
      %p44 = scmp.ne.s32.totalorder %s29, %s43
      %p45 = scmp.eq.s32.totalorder %s24, 0
      %p46 = por %p44, %p45
      %s48 = sadd.s32 %s47, 1
      %p51 = scmp.eq.s32.totalorder %s18, 1
      %p52 = scmp.ne.s32.totalorder %s47, %s49
      %p53 = scmp.eq.s32.totalorder %s18, 0
      %p54 = por %p52, %p53
      %p55 = scmp.ne.s32.totalorder %s47, %s49
      %p56 = scmp.eq.s32.totalorder %s23, 1
      %p57 = por %p55, %p56
      %p58 = scmp.ne.s32.totalorder %s49, %s50
      %p59 = scmp.eq.s32.totalorder %s23, 0
      %p60 = por %p58, %p59
      %p61 = scmp.ne.s32.totalorder %s49, %s50
      %p62 = scmp.eq.s32.totalorder %s24, 1
      %p63 = por %p61, %p62
      %p65 = scmp.ne.s32.totalorder %s50, %s64
      %p66 = scmp.eq.s32.totalorder %s24, 0
      %p67 = por %p65, %p66
      %s68 = ssub.s32 %s18, %s25
      %p69 = scmp.eq.s32.totalorder %s68, 0
      %s71 = sadd.s32 %s70, 1
      %s72 = scalar_select %p69, %s70, %s71
      %p75 = pneg %p69
      %p76 = scmp.eq.s32.totalorder %s18, 1
      %p77 = por %p75, %p76
      %p78 = scmp.ne.s32.totalorder %s70, %s73
      %p79 = scmp.eq.s32.totalorder %s18, 0
      %p80 = por %p78, %p79
      %p81 = scmp.ne.s32.totalorder %s70, %s73
      %p82 = scmp.eq.s32.totalorder %s23, 1
      %p83 = por %p81, %p82
      %p84 = scmp.ne.s32.totalorder %s73, %s74
      %p85 = scmp.eq.s32.totalorder %s23, 0
      %p86 = por %p84, %p85
      %p87 = scmp.ne.s32.totalorder %s73, %s74
      %p88 = scmp.eq.s32.totalorder %s24, 1
      %p89 = por %p87, %p88
      %p91 = scmp.ne.s32.totalorder %s74, %s90
      %p92 = scmp.eq.s32.totalorder %s24, 0
      %p93 = por %p91, %p92
      %p94 = scmp.le.s32.totalorder 1, %s18
      %p95 = scmp.lt.s32.totalorder %s18, 3
      %p96 = pnand %p94, %p95
      %p97 = pneg %p96
      // Predicated region
      $region9: #{tpu_custom_call.1} parent=5 // pred_check
        _
      $region10: #{tpu_custom_call.1} parent=5 // pred_check_branch
        %99 = sbr.rel (%p96) target = $region12
      $region11: #{tpu_custom_call.1} parent=5 // pred_region
        %s100 = ssub.s32 %s18, 1
        // Predicated region
        $region13: #{tpu_custom_call.1} parent=11 // pred_check
          %p101 = pneg %p39
        $region14: #{tpu_custom_call.1} parent=11 // pred_check_branch
          %103 = sbr.rel (%p101) target = $region16
        $region15: #{tpu_custom_call.1} parent=11 // pred_region
          %s105 = ssub.s32 1024, 1024
          %106 = vsyncadd [#allocation7], %s105
          %s107 = sshll.u32 [#allocation6], 4
          %s108 = int_to_ptr.vmem [resolvable:$true] %s107
          %113 = dma.hbm_to_vmem [thread:$0]  %s2, 1024, %s108, [#allocation7], 64, 64, 4
        $region16: #{tpu_custom_call.1} parent=11 // pred_fallthru
          _
        // Predicated region
        $region17: #{tpu_custom_call.1} parent=11 // pred_check
          %p114 = pneg %p60
        $region18: #{tpu_custom_call.1} parent=11 // pred_check_branch
          %116 = sbr.rel (%p114) target = $region20
        $region19: #{tpu_custom_call.1} parent=11 // pred_region
          _
        $region20: #{tpu_custom_call.1} parent=11 // pred_fallthru
          _
      $region12: #{tpu_custom_call.1} parent=5 // pred_fallthru
        _
      %p117 = scmp.lt.s32.totalorder %s18, 2
      // Predicated region
      $region21: #{tpu_custom_call.1} parent=5 // pred_check
        %p118 = pneg %p117
      $region22: #{tpu_custom_call.1} parent=5 // pred_check_branch
        %120 = sbr.rel (%p118) target = $region24
      $region23: #{tpu_custom_call.1} parent=5 // pred_region
        _
      $region24: #{tpu_custom_call.1} parent=5 // pred_fallthru
        _
      %p121 = scmp.le.s32.totalorder 1, %s18
      %p122 = scmp.lt.s32.totalorder %s18, 3
      %p123 = pnand %p121, %p122
      %p124 = pneg %p123
      // Predicated region
      $region25: #{tpu_custom_call.1} parent=5 // pred_check
        _
      $region26: #{tpu_custom_call.1} parent=5 // pred_check_branch
        %126 = sbr.rel (%p123) target = $region28
      $region27: #{tpu_custom_call.1} parent=5 // pred_region
        %s127 = ssub.s32 %s18, 1
        // Predicated region
        $region29: #{tpu_custom_call.1} parent=27 // pred_check
          %p128 = pneg %p39
        $region30: #{tpu_custom_call.1} parent=27 // pred_check_branch
          %130 = sbr.rel (%p128) target = $region32
        $region31: #{tpu_custom_call.1} parent=27 // pred_region
          %131 = dma.done [#allocation7], 1024
        $region32: #{tpu_custom_call.1} parent=27 // pred_fallthru
          _
        %p132 = pneg %p39
        %p133 = pneg %p36
        %p134 = pneg %p60
        %p135 = pneg %p57
        %p136 = pneg %p86
        %p137 = pneg %p83
        %s138 = sand.u32 %s73, 1
        %s139 = scalar_lea.sflag [#allocation8], %s138
        %s140 = sand.u32 %s73, 1
        %s141 = smul.addr %s140, 16
        %s142 = scalar_lea.vmem [#allocation9], %s141
        %s143 = smul.u32 2, %s23
        %s145 = smul.u32 %s23, 16
        %s146 = sld [smem:[#allocation5 + %s145]]
        %p147 = scmp.gt.s32.totalorder %s146, 0
        %s148 = scalar_select %p147, %s146, 0
        %p149 = scmp.lt.s32.totalorder %s148, 63
        %s150 = scalar_select %p149, %s148, 63
        %s151 = smul.addr %s150, 16
        %s152 = scalar_lea.hbm %s1, %s151
        // Predicated region
        $region33: #{tpu_custom_call.1} parent=27 // pred_check
          _
        $region34: #{tpu_custom_call.1} parent=27 // pred_check_branch
          %154 = sbr.rel target = $region36
        $region35: #{tpu_custom_call.1} parent=27 // pred_region
          %155 = sst [smem:[#allocation12]] [#allocation11]
          %156 = sst [smem:[#allocation13]] [#allocation10]
        $region36: #{tpu_custom_call.1} parent=27 // pred_fallthru
          _
        %158 = shalt.err (0)
        %s160 = sshll.u32 [#allocation2], 4
        %s161 = int_to_ptr.vmem [resolvable:$true] %s160
        %163 = dma.hbm_to_vmem [thread:$0]  %s152, 16, %s161, [#allocation3]
        %s164 = sadd.s32 %s145, 1
        %s165 = sld [smem:[#allocation5 + %s164]]
        %p166 = scmp.gt.s32.totalorder %s165, 0
        %s167 = scalar_select %p166, %s165, 0
        %p168 = scmp.lt.s32.totalorder %s167, 63
        %s169 = scalar_select %p168, %s167, 63
        %s170 = smul.addr %s169, 16
        %s171 = scalar_lea.hbm %s1, %s170
        %s172 = scalar_lea.vmem [#allocation2], 1
        // Predicated region
        $region37: #{tpu_custom_call.1} parent=27 // pred_check
          _
        $region38: #{tpu_custom_call.1} parent=27 // pred_check_branch
          %174 = sbr.rel target = $region40
        $region39: #{tpu_custom_call.1} parent=27 // pred_region
          %175 = sst [smem:[#allocation12]] [#allocation15]
          %176 = sst [smem:[#allocation13]] [#allocation14]
        $region40: #{tpu_custom_call.1} parent=27 // pred_fallthru
          _
        %178 = shalt.err (0)
        %s180 = sshll.u32 %s172, 4
        %s181 = int_to_ptr.vmem [resolvable:$true] %s180
        %183 = dma.hbm_to_vmem [thread:$0]  %s171, 16, %s181, [#allocation3]
        %s184 = sadd.s32 %s145, 2
        %s185 = sld [smem:[#allocation5 + %s184]]
        %p186 = scmp.gt.s32.totalorder %s185, 0
        %s187 = scalar_select %p186, %s185, 0
        %p188 = scmp.lt.s32.totalorder %s187, 63
        %s189 = scalar_select %p188, %s187, 63
        %s190 = smul.addr %s189, 16
        %s191 = scalar_lea.hbm %s1, %s190
        %s192 = scalar_lea.vmem [#allocation2], 2
        // Predicated region
        $region41: #{tpu_custom_call.1} parent=27 // pred_check
          _
        $region42: #{tpu_custom_call.1} parent=27 // pred_check_branch
          %194 = sbr.rel target = $region44
        $region43: #{tpu_custom_call.1} parent=27 // pred_region
          %195 = sst [smem:[#allocation12]] [#allocation17]
          %196 = sst [smem:[#allocation13]] [#allocation16]
        $region44: #{tpu_custom_call.1} parent=27 // pred_fallthru
          _
        %198 = shalt.err (0)
        %s200 = sshll.u32 %s192, 4
        %s201 = int_to_ptr.vmem [resolvable:$true] %s200
        %203 = dma.hbm_to_vmem [thread:$0]  %s191, 16, %s201, [#allocation3]
        %s204 = sadd.s32 %s145, 3
        %s205 = sld [smem:[#allocation5 + %s204]]
        %p206 = scmp.gt.s32.totalorder %s205, 0
        %s207 = scalar_select %p206, %s205, 0
        %p208 = scmp.lt.s32.totalorder %s207, 63
        %s209 = scalar_select %p208, %s207, 63
        %s210 = smul.addr %s209, 16
        %s211 = scalar_lea.hbm %s1, %s210
        %s212 = scalar_lea.vmem [#allocation2], 3
        // Predicated region
        $region45: #{tpu_custom_call.1} parent=27 // pred_check
          _
        $region46: #{tpu_custom_call.1} parent=27 // pred_check_branch
          %214 = sbr.rel target = $region48
        $region47: #{tpu_custom_call.1} parent=27 // pred_region
          %215 = sst [smem:[#allocation12]] [#allocation19]
          %216 = sst [smem:[#allocation13]] [#allocation18]
        $region48: #{tpu_custom_call.1} parent=27 // pred_fallthru
          _
        %218 = shalt.err (0)
        %s220 = sshll.u32 %s212, 4
        %s221 = int_to_ptr.vmem [resolvable:$true] %s220
        %223 = dma.hbm_to_vmem [thread:$0]  %s211, 16, %s221, [#allocation3]
        %s224 = sadd.s32 %s145, 4
        %s225 = sld [smem:[#allocation5 + %s224]]
        %p226 = scmp.gt.s32.totalorder %s225, 0
        %s227 = scalar_select %p226, %s225, 0
        %p228 = scmp.lt.s32.totalorder %s227, 63
        %s229 = scalar_select %p228, %s227, 63
        %s230 = smul.addr %s229, 16
        %s231 = scalar_lea.hbm %s1, %s230
        %s232 = scalar_lea.vmem [#allocation2], 4
        // Predicated region
        $region49: #{tpu_custom_call.1} parent=27 // pred_check
          _
        $region50: #{tpu_custom_call.1} parent=27 // pred_check_branch
          %234 = sbr.rel target = $region52
        $region51: #{tpu_custom_call.1} parent=27 // pred_region
          %235 = sst [smem:[#allocation12]] [#allocation21]
          %236 = sst [smem:[#allocation13]] [#allocation20]
        $region52: #{tpu_custom_call.1} parent=27 // pred_fallthru
          _
        %238 = shalt.err (0)
        %s240 = sshll.u32 %s232, 4
        %s241 = int_to_ptr.vmem [resolvable:$true] %s240
        %243 = dma.hbm_to_vmem [thread:$0]  %s231, 16, %s241, [#allocation3]
        %s244 = sadd.s32 %s145, 5
        %s245 = sld [smem:[#allocation5 + %s244]]
        %p246 = scmp.gt.s32.totalorder %s245, 0
        %s247 = scalar_select %p246, %s245, 0
        %p248 = scmp.lt.s32.totalorder %s247, 63
        %s249 = scalar_select %p248, %s247, 63
        %s250 = smul.addr %s249, 16
        %s251 = scalar_lea.hbm %s1, %s250
        %s252 = scalar_lea.vmem [#allocation2], 5
        // Predicated region
        $region53: #{tpu_custom_call.1} parent=27 // pred_check
          _
        $region54: #{tpu_custom_call.1} parent=27 // pred_check_branch
          %254 = sbr.rel target = $region56
        $region55: #{tpu_custom_call.1} parent=27 // pred_region
          %255 = sst [smem:[#allocation12]] [#allocation23]
          %256 = sst [smem:[#allocation13]] [#allocation22]
        $region56: #{tpu_custom_call.1} parent=27 // pred_fallthru
          _
        %258 = shalt.err (0)
        %s260 = sshll.u32 %s252, 4
        %s261 = int_to_ptr.vmem [resolvable:$true] %s260
        %263 = dma.hbm_to_vmem [thread:$0]  %s251, 16, %s261, [#allocation3]
        %s264 = sadd.s32 %s145, 6
        %s265 = sld [smem:[#allocation5 + %s264]]
        %p266 = scmp.gt.s32.totalorder %s265, 0
        %s267 = scalar_select %p266, %s265, 0
        %p268 = scmp.lt.s32.totalorder %s267, 63
        %s269 = scalar_select %p268, %s267, 63
        %s270 = smul.addr %s269, 16
        %s271 = scalar_lea.hbm %s1, %s270
        %s272 = scalar_lea.vmem [#allocation2], 6
        // Predicated region
        $region57: #{tpu_custom_call.1} parent=27 // pred_check
          _
        $region58: #{tpu_custom_call.1} parent=27 // pred_check_branch
          %274 = sbr.rel target = $region60
        $region59: #{tpu_custom_call.1} parent=27 // pred_region
          %275 = sst [smem:[#allocation12]] [#allocation25]
          %276 = sst [smem:[#allocation13]] [#allocation24]
        $region60: #{tpu_custom_call.1} parent=27 // pred_fallthru
          _
        %278 = shalt.err (0)
        %s280 = sshll.u32 %s272, 4
        %s281 = int_to_ptr.vmem [resolvable:$true] %s280
        %283 = dma.hbm_to_vmem [thread:$0]  %s271, 16, %s281, [#allocation3]
        %s284 = sadd.s32 %s145, 7
        %s285 = sld [smem:[#allocation5 + %s284]]
        %p286 = scmp.gt.s32.totalorder %s285, 0
        %s287 = scalar_select %p286, %s285, 0
        %p288 = scmp.lt.s32.totalorder %s287, 63
        %s289 = scalar_select %p288, %s287, 63
        %s290 = smul.addr %s289, 16
        %s291 = scalar_lea.hbm %s1, %s290
        %s292 = scalar_lea.vmem [#allocation2], 7
        // Predicated region
        $region61: #{tpu_custom_call.1} parent=27 // pred_check
          _
        $region62: #{tpu_custom_call.1} parent=27 // pred_check_branch
          %294 = sbr.rel target = $region64
        $region63: #{tpu_custom_call.1} parent=27 // pred_region
          %295 = sst [smem:[#allocation12]] [#allocation27]
          %296 = sst [smem:[#allocation13]] [#allocation26]
        $region64: #{tpu_custom_call.1} parent=27 // pred_fallthru
          _
        %298 = shalt.err (0)
        %s300 = sshll.u32 %s292, 4
        %s301 = int_to_ptr.vmem [resolvable:$true] %s300
        %303 = dma.hbm_to_vmem [thread:$0]  %s291, 16, %s301, [#allocation3]
        %s304 = sadd.s32 %s145, 8
        %s305 = sld [smem:[#allocation5 + %s304]]
        %p306 = scmp.gt.s32.totalorder %s305, 0
        %s307 = scalar_select %p306, %s305, 0
        %p308 = scmp.lt.s32.totalorder %s307, 63
        %s309 = scalar_select %p308, %s307, 63
        %s310 = smul.addr %s309, 16
        %s311 = scalar_lea.hbm %s1, %s310
        %s312 = scalar_lea.vmem [#allocation2], 8
        %s313 = scalar_lea.sflag [#allocation3], 1
        // Predicated region
        $region65: #{tpu_custom_call.1} parent=27 // pred_check
          _
        $region66: #{tpu_custom_call.1} parent=27 // pred_check_branch
          %315 = sbr.rel target = $region68
        $region67: #{tpu_custom_call.1} parent=27 // pred_region
          %316 = sst [smem:[#allocation12]] [#allocation29]
          %317 = sst [smem:[#allocation13]] [#allocation28]
        $region68: #{tpu_custom_call.1} parent=27 // pred_fallthru
          _
        %319 = shalt.err (0)
        %s321 = sshll.u32 %s312, 4
        %s322 = int_to_ptr.vmem [resolvable:$true] %s321
        %324 = dma.hbm_to_vmem [thread:$0]  %s311, 16, %s322, %s313
        %s325 = sadd.s32 %s145, 9
        %s326 = sld [smem:[#allocation5 + %s325]]
        %p327 = scmp.gt.s32.totalorder %s326, 0
        %s328 = scalar_select %p327, %s326, 0
        %p329 = scmp.lt.s32.totalorder %s328, 63
        %s330 = scalar_select %p329, %s328, 63
        %s331 = smul.addr %s330, 16
        %s332 = scalar_lea.hbm %s1, %s331
        %s333 = scalar_lea.vmem [#allocation2], 9
        // Predicated region
        $region69: #{tpu_custom_call.1} parent=27 // pred_check
          _
        $region70: #{tpu_custom_call.1} parent=27 // pred_check_branch
          %335 = sbr.rel target = $region72
        $region71: #{tpu_custom_call.1} parent=27 // pred_region
          %336 = sst [smem:[#allocation12]] [#allocation31]
          %337 = sst [smem:[#allocation13]] [#allocation30]
        $region72: #{tpu_custom_call.1} parent=27 // pred_fallthru
          _
        %339 = shalt.err (0)
        %s341 = sshll.u32 %s333, 4
        %s342 = int_to_ptr.vmem [resolvable:$true] %s341
        %344 = dma.hbm_to_vmem [thread:$0]  %s332, 16, %s342, %s313
        %s345 = sadd.s32 %s145, 10
        %s346 = sld [smem:[#allocation5 + %s345]]
        %p347 = scmp.gt.s32.totalorder %s346, 0
        %s348 = scalar_select %p347, %s346, 0
        %p349 = scmp.lt.s32.totalorder %s348, 63
        %s350 = scalar_select %p349, %s348, 63
        %s351 = smul.addr %s350, 16
        %s352 = scalar_lea.hbm %s1, %s351
        %s353 = scalar_lea.vmem [#allocation2], 10
        // Predicated region
        $region73: #{tpu_custom_call.1} parent=27 // pred_check
          _
        $region74: #{tpu_custom_call.1} parent=27 // pred_check_branch
          %355 = sbr.rel target = $region76
        $region75: #{tpu_custom_call.1} parent=27 // pred_region
          %356 = sst [smem:[#allocation12]] [#allocation33]
          %357 = sst [smem:[#allocation13]] [#allocation32]
        $region76: #{tpu_custom_call.1} parent=27 // pred_fallthru
          _
        %359 = shalt.err (0)
        %s361 = sshll.u32 %s353, 4
        %s362 = int_to_ptr.vmem [resolvable:$true] %s361
        %364 = dma.hbm_to_vmem [thread:$0]  %s352, 16, %s362, %s313
        %s365 = sadd.s32 %s145, 11
        %s366 = sld [smem:[#allocation5 + %s365]]
        %p367 = scmp.gt.s32.totalorder %s366, 0
        %s368 = scalar_select %p367, %s366, 0
        %p369 = scmp.lt.s32.totalorder %s368, 63
        %s370 = scalar_select %p369, %s368, 63
        %s371 = smul.addr %s370, 16
        %s372 = scalar_lea.hbm %s1, %s371
        %s373 = scalar_lea.vmem [#allocation2], 11
        // Predicated region
        $region77: #{tpu_custom_call.1} parent=27 // pred_check
          _
        $region78: #{tpu_custom_call.1} parent=27 // pred_check_branch
          %375 = sbr.rel target = $region80
        $region79: #{tpu_custom_call.1} parent=27 // pred_region
          %376 = sst [smem:[#allocation12]] [#allocation35]
          %377 = sst [smem:[#allocation13]] [#allocation34]
        $region80: #{tpu_custom_call.1} parent=27 // pred_fallthru
          _
        %379 = shalt.err (0)
        %s381 = sshll.u32 %s373, 4
        %s382 = int_to_ptr.vmem [resolvable:$true] %s381
        %384 = dma.hbm_to_vmem [thread:$0]  %s372, 16, %s382, %s313
        %s385 = sadd.s32 %s145, 12
        %s386 = sld [smem:[#allocation5 + %s385]]
        %p387 = scmp.gt.s32.totalorder %s386, 0
        %s388 = scalar_select %p387, %s386, 0
        %p389 = scmp.lt.s32.totalorder %s388, 63
        %s390 = scalar_select %p389, %s388, 63
        %s391 = smul.addr %s390, 16
        %s392 = scalar_lea.hbm %s1, %s391
        %s393 = scalar_lea.vmem [#allocation2], 12
        // Predicated region
        $region81: #{tpu_custom_call.1} parent=27 // pred_check
          _
        $region82: #{tpu_custom_call.1} parent=27 // pred_check_branch
          %395 = sbr.rel target = $region84
        $region83: #{tpu_custom_call.1} parent=27 // pred_region
          %396 = sst [smem:[#allocation12]] [#allocation37]
          %397 = sst [smem:[#allocation13]] [#allocation36]
        $region84: #{tpu_custom_call.1} parent=27 // pred_fallthru
          _
        %399 = shalt.err (0)
        %s401 = sshll.u32 %s393, 4
        %s402 = int_to_ptr.vmem [resolvable:$true] %s401
        %404 = dma.hbm_to_vmem [thread:$0]  %s392, 16, %s402, %s313
        %s405 = sadd.s32 %s145, 13
        %s406 = sld [smem:[#allocation5 + %s405]]
        %p407 = scmp.gt.s32.totalorder %s406, 0
        %s408 = scalar_select %p407, %s406, 0
        %p409 = scmp.lt.s32.totalorder %s408, 63
        %s410 = scalar_select %p409, %s408, 63
        %s411 = smul.addr %s410, 16
        %s412 = scalar_lea.hbm %s1, %s411
        %s413 = scalar_lea.vmem [#allocation2], 13
        // Predicated region
        $region85: #{tpu_custom_call.1} parent=27 // pred_check
          _
        $region86: #{tpu_custom_call.1} parent=27 // pred_check_branch
          %415 = sbr.rel target = $region88
        $region87: #{tpu_custom_call.1} parent=27 // pred_region
          %416 = sst [smem:[#allocation12]] [#allocation39]
          %417 = sst [smem:[#allocation13]] [#allocation38]
        $region88: #{tpu_custom_call.1} parent=27 // pred_fallthru
          _
        %419 = shalt.err (0)
        %s421 = sshll.u32 %s413, 4
        %s422 = int_to_ptr.vmem [resolvable:$true] %s421
        %424 = dma.hbm_to_vmem [thread:$0]  %s412, 16, %s422, %s313
        %s425 = sadd.s32 %s145, 14
        %s426 = sld [smem:[#allocation5 + %s425]]
        %p427 = scmp.gt.s32.totalorder %s426, 0
        %s428 = scalar_select %p427, %s426, 0
        %p429 = scmp.lt.s32.totalorder %s428, 63
        %s430 = scalar_select %p429, %s428, 63
        %s431 = smul.addr %s430, 16
        %s432 = scalar_lea.hbm %s1, %s431
        %s433 = scalar_lea.vmem [#allocation2], 14
        // Predicated region
        $region89: #{tpu_custom_call.1} parent=27 // pred_check
          _
        $region90: #{tpu_custom_call.1} parent=27 // pred_check_branch
          %435 = sbr.rel target = $region92
        $region91: #{tpu_custom_call.1} parent=27 // pred_region
          %436 = sst [smem:[#allocation12]] [#allocation41]
          %437 = sst [smem:[#allocation13]] [#allocation40]
        $region92: #{tpu_custom_call.1} parent=27 // pred_fallthru
          _
        %439 = shalt.err (0)
        %s441 = sshll.u32 %s433, 4
        %s442 = int_to_ptr.vmem [resolvable:$true] %s441
        %444 = dma.hbm_to_vmem [thread:$0]  %s432, 16, %s442, %s313
        %s445 = sadd.s32 %s145, 15
        %s446 = sld [smem:[#allocation5 + %s445]]
        %p447 = scmp.gt.s32.totalorder %s446, 0
        %s448 = scalar_select %p447, %s446, 0
        %p449 = scmp.lt.s32.totalorder %s448, 63
        %s450 = scalar_select %p449, %s448, 63
        %s451 = smul.addr %s450, 16
        %s452 = scalar_lea.hbm %s1, %s451
        %s453 = scalar_lea.vmem [#allocation2], 15
        // Predicated region
        $region93: #{tpu_custom_call.1} parent=27 // pred_check
          _
        $region94: #{tpu_custom_call.1} parent=27 // pred_check_branch
          %455 = sbr.rel target = $region96
        $region95: #{tpu_custom_call.1} parent=27 // pred_region
          %456 = sst [smem:[#allocation12]] [#allocation43]
          %457 = sst [smem:[#allocation13]] [#allocation42]
        $region96: #{tpu_custom_call.1} parent=27 // pred_fallthru
          _
        %459 = shalt.err (0)
        %s461 = sshll.u32 %s453, 4
        %s462 = int_to_ptr.vmem [resolvable:$true] %s461
        %464 = dma.hbm_to_vmem [thread:$0]  %s452, 16, %s462, %s313
        %s465 = smul.u32 1, 1
        %s466 = sshll.u32 %s465, 4
        %467 = dma.done [#allocation3], %s466
        %s468 = sshll.u32 %s465, 4
        %469 = dma.done [#allocation3], %s468
        %s470 = sshll.u32 %s465, 4
        %471 = dma.done [#allocation3], %s470
        %s472 = sshll.u32 %s465, 4
        %473 = dma.done [#allocation3], %s472
        %s474 = sshll.u32 %s465, 4
        %475 = dma.done [#allocation3], %s474
        %s476 = sshll.u32 %s465, 4
        %477 = dma.done [#allocation3], %s476
        %s478 = sshll.u32 %s465, 4
        %479 = dma.done [#allocation3], %s478
        %s480 = sshll.u32 %s465, 4
        %481 = dma.done [#allocation3], %s480
        %v482 = vld [vmem:[#allocation2] sm:$0xff]
        %v483 = vpack.c.bf16 %v482, %v482
        %v484 = vld [vmem:[#allocation6] sm:$0xf]
        %v485 = vld [vmem:[#allocation6 + $0x4] sm:$0xf]
        %v486 = vld [vmem:[#allocation6 + $0x8] sm:$0xf]
        %v487 = vld [vmem:[#allocation6 + $0xc] sm:$0xf]
        %v488 = vld [vmem:[#allocation6 + $0x10] sm:$0xf]
        %v489 = vld [vmem:[#allocation6 + $0x14] sm:$0xf]
        %v490 = vld [vmem:[#allocation6 + $0x18] sm:$0xf]
        %v491 = vld [vmem:[#allocation6 + $0x1c] sm:$0xf]
        %v492 = vld [vmem:[#allocation6 + $0x20] sm:$0xf]
        %v493 = vld [vmem:[#allocation6 + $0x24] sm:$0xf]
        %v494 = vld [vmem:[#allocation6 + $0x28] sm:$0xf]
        %v495 = vld [vmem:[#allocation6 + $0x2c] sm:$0xf]
        %v496 = vld [vmem:[#allocation6 + $0x30] sm:$0xf]
        %v497 = vld [vmem:[#allocation6 + $0x34] sm:$0xf]
        %v498 = vld [vmem:[#allocation6 + $0x38] sm:$0xf]
        %v499 = vld [vmem:[#allocation6 + $0x3c] sm:$0xf]
        %v500 = vld [vmem:[%s3] sm:$0x1]
        %v502 = vlaneseq
        %v503 = vshrl.u32 %v502, 7
        %v504 = vsub.s32 0, %v503
        %v505 = vrot.slane %v500, %v504
        %v523 = vunpack.c.l.b16 %v484
        %v524 = vunpack.c.l.b16 %v485
        %v525 = vunpack.c.l.b16 %v486
        %v526 = vunpack.c.l.b16 %v487
        %v527 = vunpack.c.l.b16 %v488
        %v528 = vunpack.c.l.b16 %v489
        %v529 = vunpack.c.l.b16 %v490
        %v530 = vunpack.c.l.b16 %v491
        %v531 = vunpack.c.l.b16 %v492
        %v532 = vunpack.c.l.b16 %v493
        %v533 = vunpack.c.l.b16 %v494
        %v534 = vunpack.c.l.b16 %v495
        %v535 = vunpack.c.l.b16 %v496
        %v536 = vunpack.c.l.b16 %v497
        %v537 = vunpack.c.l.b16 %v498
        %v538 = vunpack.c.l.b16 %v499
        %v539 = vpack.c.b16 %v524, %v523
        %v540 = vpack.c.b16 %v526, %v525
        %v541 = vpack.c.b16 %v528, %v527
        %v542 = vpack.c.b16 %v530, %v529
        %v543 = vpack.c.b16 %v532, %v531
        %v544 = vpack.c.b16 %v534, %v533
        %v545 = vpack.c.b16 %v536, %v535
        %v546 = vpack.c.b16 %v538, %v537
        %555 = vmatprep.subr.bf16.mxu0 0
        %556 = vmatpush1.bf16.msra.mxu0 %v539
        %557 = vmatprep.subr.bf16.mxu0 0
        %558 = vmatpush1.bf16.msra.mxu0 %v540
        %559 = vmatprep.subr.bf16.mxu0 0
        %560 = vmatpush1.bf16.msra.mxu0 %v541
        %561 = vmatprep.subr.bf16.mxu0 0
        %562 = vmatpush1.bf16.msra.mxu0 %v542
        %563 = vmatprep.subr.bf16.mxu0 0
        %564 = vmatpush1.bf16.msra.mxu0 %v543
        %565 = vmatprep.subr.bf16.mxu0 0
        %566 = vmatpush1.bf16.msra.mxu0 %v544
        %567 = vmatprep.subr.bf16.mxu0 0
        %568 = vmatpush1.bf16.msra.mxu0 %v545
        %569 = vmatprep.subr.bf16.mxu0 0
        %570 = vmatpush1.bf16.msra.mxu0 %v546
        %571 = vmatprep.subr.bf16.mxu0 0
        %572 = vmatpush1.bf16.msra.mxu0 0
        %573 = vmatprep.subr.bf16.mxu0 0
        %574 = vmatpush1.bf16.msra.mxu0 0
        %575 = vmatprep.subr.bf16.mxu0 0
        %576 = vmatpush1.bf16.msra.mxu0 0
        %577 = vmatprep.subr.bf16.mxu0 0
        %578 = vmatpush1.bf16.msra.mxu0 0
        %579 = vmatprep.subr.bf16.mxu0 0
        %580 = vmatpush1.bf16.msra.mxu0 0
        %581 = vmatprep.subr.bf16.mxu0 0
        %582 = vmatpush1.bf16.msra.mxu0 0
        %583 = vmatprep.subr.bf16.mxu0 0
        %584 = vmatpush1.bf16.msra.mxu0 0
        %585 = vmatprep.subr.bf16.mxu0 0
        %586 = vmatpush1.bf16.msra.mxu0 0
        %587 = vmatprep.mubr.bf16.mxu0 0
        %588 = vmatmul.mubr.bf16.gmra.mrb[0].mxu0 %v483
        %v589 = vpop.f32.mrb[0].mxu0
        %v590 = vadd.f32 %v505, %v589
        %v591 = vpop.f32.mrb[0].mxu0
        %v592 = vpop.f32.mrb[0].mxu0
        %v593 = vpop.f32.mrb[0].mxu0
        %594 = vdwg.mxu0
        %595 = vst [vmem:[%s142] sm:$0xff] %v590
        %s596 = sshll.u32 %s465, 4
        %597 = dma.done %s313, %s596
        %s598 = sshll.u32 %s465, 4
        %599 = dma.done %s313, %s598
        %s600 = sshll.u32 %s465, 4
        %601 = dma.done %s313, %s600
        %s602 = sshll.u32 %s465, 4
        %603 = dma.done %s313, %s602
        %s604 = sshll.u32 %s465, 4
        %605 = dma.done %s313, %s604
        %s606 = sshll.u32 %s465, 4
        %607 = dma.done %s313, %s606
        %s608 = sshll.u32 %s465, 4
        %609 = dma.done %s313, %s608
        %s610 = sshll.u32 %s465, 4
        %611 = dma.done %s313, %s610
        %v612 = vld [vmem:[#allocation2 + $0x8] sm:$0xff]
        %v613 = vpack.c.bf16 %v612, %v612
        %v614 = vld [vmem:[#allocation6] sm:$0xf]
        %v615 = vld [vmem:[#allocation6 + $0x4] sm:$0xf]
        %v616 = vld [vmem:[#allocation6 + $0x8] sm:$0xf]
        %v617 = vld [vmem:[#allocation6 + $0xc] sm:$0xf]
        %v618 = vld [vmem:[#allocation6 + $0x10] sm:$0xf]
        %v619 = vld [vmem:[#allocation6 + $0x14] sm:$0xf]
        %v620 = vld [vmem:[#allocation6 + $0x18] sm:$0xf]
        %v621 = vld [vmem:[#allocation6 + $0x1c] sm:$0xf]
        %v622 = vld [vmem:[#allocation6 + $0x20] sm:$0xf]
        %v623 = vld [vmem:[#allocation6 + $0x24] sm:$0xf]
        %v624 = vld [vmem:[#allocation6 + $0x28] sm:$0xf]
        %v625 = vld [vmem:[#allocation6 + $0x2c] sm:$0xf]
        %v626 = vld [vmem:[#allocation6 + $0x30] sm:$0xf]
        %v627 = vld [vmem:[#allocation6 + $0x34] sm:$0xf]
        %v628 = vld [vmem:[#allocation6 + $0x38] sm:$0xf]
        %v629 = vld [vmem:[#allocation6 + $0x3c] sm:$0xf]
        %v630 = vld [vmem:[%s3] sm:$0x1]
        %v632 = vlaneseq
        %v633 = vshrl.u32 %v632, 7
        %v634 = vsub.s32 0, %v633
        %v635 = vrot.slane %v630, %v634
        %v653 = vunpack.c.l.b16 %v614
        %v654 = vunpack.c.l.b16 %v615
        %v655 = vunpack.c.l.b16 %v616
        %v656 = vunpack.c.l.b16 %v617
        %v657 = vunpack.c.l.b16 %v618
        %v658 = vunpack.c.l.b16 %v619
        %v659 = vunpack.c.l.b16 %v620
        %v660 = vunpack.c.l.b16 %v621
        %v661 = vunpack.c.l.b16 %v622
        %v662 = vunpack.c.l.b16 %v623
        %v663 = vunpack.c.l.b16 %v624
        %v664 = vunpack.c.l.b16 %v625
        %v665 = vunpack.c.l.b16 %v626
        %v666 = vunpack.c.l.b16 %v627
        %v667 = vunpack.c.l.b16 %v628
        %v668 = vunpack.c.l.b16 %v629
        %v669 = vpack.c.b16 %v654, %v653
        %v670 = vpack.c.b16 %v656, %v655
        %v671 = vpack.c.b16 %v658, %v657
        %v672 = vpack.c.b16 %v660, %v659
        %v673 = vpack.c.b16 %v662, %v661
        %v674 = vpack.c.b16 %v664, %v663
        %v675 = vpack.c.b16 %v666, %v665
        %v676 = vpack.c.b16 %v668, %v667
        %685 = vmatprep.subr.bf16.mxu0 0
        %686 = vmatpush1.bf16.msra.mxu0 %v669
        %687 = vmatprep.subr.bf16.mxu0 0
        %688 = vmatpush1.bf16.msra.mxu0 %v670
        %689 = vmatprep.subr.bf16.mxu0 0
        %690 = vmatpush1.bf16.msra.mxu0 %v671
        %691 = vmatprep.subr.bf16.mxu0 0
        %692 = vmatpush1.bf16.msra.mxu0 %v672
        %693 = vmatprep.subr.bf16.mxu0 0
        %694 = vmatpush1.bf16.msra.mxu0 %v673
        %695 = vmatprep.subr.bf16.mxu0 0
        %696 = vmatpush1.bf16.msra.mxu0 %v674
        %697 = vmatprep.subr.bf16.mxu0 0
        %698 = vmatpush1.bf16.msra.mxu0 %v675
        %699 = vmatprep.subr.bf16.mxu0 0
        %700 = vmatpush1.bf16.msra.mxu0 %v676
        %701 = vmatprep.subr.bf16.mxu0 0
        %702 = vmatpush1.bf16.msra.mxu0 0
        %703 = vmatprep.subr.bf16.mxu0 0
        %704 = vmatpush1.bf16.msra.mxu0 0
        %705 = vmatprep.subr.bf16.mxu0 0
        %706 = vmatpush1.bf16.msra.mxu0 0
        %707 = vmatprep.subr.bf16.mxu0 0
        %708 = vmatpush1.bf16.msra.mxu0 0
        %709 = vmatprep.subr.bf16.mxu0 0
        %710 = vmatpush1.bf16.msra.mxu0 0
        %711 = vmatprep.subr.bf16.mxu0 0
        %712 = vmatpush1.bf16.msra.mxu0 0
        %713 = vmatprep.subr.bf16.mxu0 0
        %714 = vmatpush1.bf16.msra.mxu0 0
        %715 = vmatprep.subr.bf16.mxu0 0
        %716 = vmatpush1.bf16.msra.mxu0 0
        %717 = vmatprep.mubr.bf16.mxu0 0
        %718 = vmatmul.mubr.bf16.gmra.mrb[0].mxu0 %v613
        %v719 = vpop.f32.mrb[0].mxu0
        %v720 = vadd.f32 %v635, %v719
        %v721 = vpop.f32.mrb[0].mxu0
        %v722 = vpop.f32.mrb[0].mxu0
        %v723 = vpop.f32.mrb[0].mxu0
        %724 = vdwg.mxu0
        %725 = vst [vmem:[%s142 + $0x8] sm:$0xff] %v720
        %s726 = sand.u32 %s73, 1
        %s727 = scalar_lea.sflag [#allocation8], %s726
        %s728 = sand.u32 %s73, 1
        %s729 = smul.addr %s728, 16
        %s730 = scalar_lea.vmem [#allocation9], %s729
        // Predicated region
        $region97: #{tpu_custom_call.1} parent=27 // pred_check
          %p731 = pneg %p83
        $region98: #{tpu_custom_call.1} parent=27 // pred_check_branch
          %733 = sbr.rel (%p731) target = $region100
        $region99: #{tpu_custom_call.1} parent=27 // pred_region
          %s734 = smul.u32 2, %s23
          %s736 = ssub.s32 256, 256
          %737 = vsyncadd %s727, %s736
          %s738 = smul.addr %s734, 128
          %s739 = scalar_lea.hbm %s4, %s738
          %s740 = sshll.u32 %s730, 4
          %s741 = int_to_ptr.vmem [resolvable:$true] %s740
          %746 = dma.vmem_to_hbm [thread:$0]  %s741, 256, %s739, %s727, 128, 128, 8
        $region100: #{tpu_custom_call.1} parent=27 // pred_fallthru
          _
      $region28: #{tpu_custom_call.1} parent=5 // pred_fallthru
        _
      %p747 = scmp.le.s32.totalorder 2, %s18
      // Predicated region
      $region101: #{tpu_custom_call.1} parent=5 // pred_check
        %p748 = pneg %p747
      $region102: #{tpu_custom_call.1} parent=5 // pred_check_branch
        %750 = sbr.rel (%p748) target = $region104
      $region103: #{tpu_custom_call.1} parent=5 // pred_region
        %s751 = ssub.s32 %s18, 2
        // Predicated region
        $region105: #{tpu_custom_call.1} parent=103 // pred_check
          %p752 = pneg %p89
        $region106: #{tpu_custom_call.1} parent=103 // pred_check_branch
          %754 = sbr.rel (%p752) target = $region108
        $region107: #{tpu_custom_call.1} parent=103 // pred_region
          %s755 = sand.u32 %s74, 1
          %s756 = scalar_lea.sflag [#allocation8], %s755
          %s757 = sand.u32 %s74, 1
          %s758 = smul.addr %s757, 16
          %s759 = scalar_lea.vmem [#allocation9], %s758
          %760 = dma.done %s756, 256
        $region108: #{tpu_custom_call.1} parent=103 // pred_fallthru
          _
      $region104: #{tpu_custom_call.1} parent=5 // pred_fallthru
        _
    $region6: #{tpu_custom_call.1} parent=1 // loop_footer
      %s22 = sadd.s32 1, %s18
    $region7: #{tpu_custom_call.1} parent=1 // loop_footer_branch
      %17 = sbr.rel target = $region3
    $region8: #{tpu_custom_call.1} parent=1 // loop_exit
      _
    %761 = vsyncpa [#allocation7], 1
    %s762 = scalar_lea.sflag [#allocation7], 1
    %763 = vsyncpa %s762, 1
    %764 = vsyncpa [#allocation8], 1
    %s765 = scalar_lea.sflag [#allocation8], 1
    %766 = vsyncpa %s765, 1
  %767 = vsyncmov [#allocation3]
  %s768 = vpop.sfrf %767
  %p769 = scmp.eq.s32.totalorder %s768, 0
  %p770 = pneg %p769
  %772 = shalt.err (%p770)
  %s773 = scalar_lea.sflag [#allocation3], 1
  %774 = vsyncmov %s773
  %s775 = vpop.sfrf %774
  %p776 = scmp.eq.s32.totalorder %s775, 0
  %p777 = pneg %p776
  %779 = shalt.err (%p777)

</llo_original>
